<compile_context>
chip_gen: v6e
topology: v6e:2x2x1
jax: 0.10.0
libtpu: 0.0.40
codegen_flags: <defaults>
</compile_context>

<pallas_src>
import functools

import jax
import jax.numpy as jnp
from jax.experimental import pallas as pl
from jax.experimental.pallas import tpu as pltpu


# ---------------------------------------------------------------------------
# helpers
# ---------------------------------------------------------------------------
def _cdiv(a, b):
    return (a + b - 1) // b


def _round_up(x, m):
    return _cdiv(x, m) * m


def _tpu_kind():
    try:
        return jax.devices()[0].device_kind.lower()
    except Exception:
        return ""


def _num_tensorcores():
    # v7x has 2 TensorCores per chip; v5e / v6e have 1.
    return 2 if "v7" in _tpu_kind() else 1


def _vmem_limit_bytes():
    # v7x: 64 MiB physical per TC -> stay at 32 MiB scoped; v5e/v6e: 128 MiB physical.
    return (32 if "v7" in _tpu_kind() else 64) * 1024 * 1024


# ---------------------------------------------------------------------------
# Pallas kernel 1: packed spectral channel mixing, both FFT directions fused.
#   For each group g:  out_g = Xr_g @ Wr_g + Xi_g @ Wi_g
# ---------------------------------------------------------------------------
def _dual_matmul_kernel(n_groups, *refs):
    ins = refs[:4 * n_groups]
    outs = refs[4 * n_groups:]
    for g in range(n_groups):
        xr, xi, wr, wi = ins[4 * g: 4 * g + 4]
        outs[g][...] = (
            jnp.dot(xr[...], wr[...], preferred_element_type=jnp.float32)
            + jnp.dot(xi[...], wi[...], preferred_element_type=jnp.float32))


def spectral_mode_matmul(groups):
    """groups: list of (xr, xi, wr, wi); all xr/xi share the row count N.

    xr/xi: (N, Kin) f32 real/imag slabs; wr/wi: (Kin, Kout) packed weights
    (Kout multiple of 128, resident in VMEM across the whole grid).
    Returns one (N, Kout_g) f32 array per group, from a single pallas_call.
    """
    n = groups[0][0].shape[0]
    num_tc = _num_tensorcores()
    if n >= 1024:
        tn = 512                                   # fits v7x VMEM with 2x-buffered weights
    else:
        # small N: one block per TensorCore (no pointless split on 1-TC chips)
        tn = max(8, _round_up(_cdiv(n, num_tc), 8))
    n_pad = _round_up(n, tn)

    padded, in_specs, out_specs, out_shapes = [], [], [], []
    flops = 0
    bytes_accessed = 0
    for (xr, xi, wr, wi) in groups:
        if n_pad != n:
            xr = jnp.pad(xr, ((0, n_pad - n), (0, 0)))
            xi = jnp.pad(xi, ((0, n_pad - n), (0, 0)))
        padded += [xr, xi, wr, wi]
        kin, kout = wr.shape
        in_specs += [
            pl.BlockSpec((tn, kin), lambda i: (i, 0)),
            pl.BlockSpec((tn, kin), lambda i: (i, 0)),
            pl.BlockSpec((kin, kout), lambda i: (0, 0)),   # resident weight
            pl.BlockSpec((kin, kout), lambda i: (0, 0)),   # resident weight
        ]
        out_specs.append(pl.BlockSpec((tn, kout), lambda i: (i, 0)))
        out_shapes.append(jax.ShapeDtypeStruct((n_pad, kout), jnp.float32))
        flops += 2 * 2 * n_pad * kin * kout
        bytes_accessed += 4 * (2 * n_pad * kin + 2 * kin * kout + n_pad * kout)

    outs = pl.pallas_call(
        functools.partial(_dual_matmul_kernel, len(groups)),
        grid=(n_pad // tn,),
        in_specs=in_specs,
        out_specs=out_specs,
        out_shape=out_shapes,
        compiler_params=pltpu.CompilerParams(
            dimension_semantics=("parallel",),
            vmem_limit_bytes=_vmem_limit_bytes()),
        cost_estimate=pl.CostEstimate(flops=flops, transcendentals=0,
                                      bytes_accessed=bytes_accessed),
    )(*padded)
    return [o[:n] for o in outs]


# ---------------------------------------------------------------------------
# Pallas kernel 2: fused (xx + xy) + backcast FeedForward, channels-first
#   y = W2 @ relu(W1 @ (xy + xx) + b1) + b2    on (C, TILE_P) blocks
# ---------------------------------------------------------------------------
def _ff_kernel(xy_ref, xx_ref, w1_ref, b1_ref, w2_ref, b2_ref, o_ref):
    x = xy_ref[0] + xx_ref[0]                                  # fused add, (C, TP)
    h = jnp.dot(w1_ref[...], x, preferred_element_type=jnp.float32) + b1_ref[...]
    h = jnp.maximum(h, 0.0)
    o_ref[0] = jnp.dot(w2_ref[...], h,
                       preferred_element_type=jnp.float32) + b2_ref[...]


def fused_add_feedforward(xy, xx, w1, b1, w2, b2):
    """xy, xx: (B, C, s1, s2); w1:(H,C), b1:(H,1), w2:(C2,H), b2:(C2,1)."""
    b, c, s1_, s2_ = xy.shape
    h_dim = w1.shape[0]
    c2 = w2.shape[0]
    p = s1_ * s2_
    xy2 = xy.reshape(b, c, p)
    xx2 = xx.reshape(b, c, p)

    num_tc = _num_tensorcores()
    # Spatial tile: lane-dense (multiple of 128), hidden activation (H x TP f32)
    # bounded to ~256 KiB, chosen to minimize padding waste.
    tp_cap = max(128, min(2048, ((256 * 1024) // max(1, 4 * h_dim)) // 128 * 128))
    best = None
    for t in (128, 256, 512, 1024, 2048):
        if t > tp_cap:
            continue
        pad = _round_up(p, t) - p
        if best is None or pad < best[0] or (pad == best[0] and t > best[1]):
            best = (pad, t)
    tp = best[1]
    p_pad = _round_up(p, tp)
    # Guarantee >=2 parallel programs on 2-TensorCore chips.
    if num_tc > 1 and b * (p_pad // tp) < 2 and tp > 128:
        tp = max(128, _round_up(_cdiv(tp, 2), 128))
        p_pad = _round_up(p, tp)
    if p_pad != p:
        xy2 = jnp.pad(xy2, ((0, 0), (0, 0), (0, p_pad - p)))
        xx2 = jnp.pad(xx2, ((0, 0), (0, 0), (0, p_pad - p)))

    flops = 2 * b * p_pad * (c * h_dim + h_dim * c2) + b * p_pad * (2 * c + h_dim + c2)
    bytes_accessed = 4 * (2 * b * c * p_pad + b * c2 * p_pad
                          + h_dim * c + h_dim + c2 * h_dim + c2)

    y = pl.pallas_call(
        _ff_kernel,
        grid=(b, p_pad // tp),
        in_specs=[
            pl.BlockSpec((1, c, tp), lambda bi, pi: (bi, 0, pi)),
            pl.BlockSpec((1, c, tp), lambda bi, pi: (bi, 0, pi)),
            pl.BlockSpec((h_dim, c), lambda bi, pi: (0, 0)),   # resident
            pl.BlockSpec((h_dim, 1), lambda bi, pi: (0, 0)),   # resident
            pl.BlockSpec((c2, h_dim), lambda bi, pi: (0, 0)),  # resident
            pl.BlockSpec((c2, 1), lambda bi, pi: (0, 0)),      # resident
        ],
        out_specs=pl.BlockSpec((1, c2, tp), lambda bi, pi: (bi, 0, pi)),
        out_shape=jax.ShapeDtypeStruct((b, c2, p_pad), jnp.float32),
        compiler_params=pltpu.CompilerParams(
            dimension_semantics=("parallel", "parallel"),
            vmem_limit_bytes=_vmem_limit_bytes()),
        cost_estimate=pl.CostEstimate(flops=flops, transcendentals=0,
                                      bytes_accessed=bytes_accessed),
    )(xy2, xx2, w1, b1, w2, b2)
    return y[:, :, :p].reshape(b, c2, s1_, s2_)


# ---------------------------------------------------------------------------
# One-time weight packing (hoisted out of the per-step forward)
# ---------------------------------------------------------------------------
def pack_spectral_weight(w, lane_pad=128):
    """w: (I, O, M, 2) real -> (W_from_re, W_from_im), each (I*M, round_up(2*O*M, 128)).

    Rows ordered (channel-major, mode-minor) to match the cheap reshape of the
    rfft slab; columns are [Re_out (o-major, m-minor) | Im_out | zero pad].
    Then  out = Xr @ W_from_re + Xi @ W_from_im  realizes, per Fourier mode m,
    out[.., o, m] = sum_i x[.., i, m] * (Wr + j*Wi)[i, o, m].
    """
    i_dim, o_dim, m, _ = w.shape
    wr = w[..., 0]
    wi = w[..., 1]
    eye = jnp.eye(m, dtype=w.dtype)

    def expand(t):                       # (I,O,M) -> (I*M, O*M); block (i,o) = diag(t[i,o,:])
        blk = t[:, :, :, None] * eye                       # (I, O, M, M)
        return jnp.transpose(blk, (0, 2, 1, 3)).reshape(i_dim * m, o_dim * m)

    a = expand(wr)
    bm = expand(wi)
    w_from_re = jnp.concatenate([a, bm], axis=1)           # hit by Re(x)
    w_from_im = jnp.concatenate([-bm, a], axis=1)          # hit by Im(x)
    kout = _round_up(2 * o_dim * m, lane_pad)
    pad = kout - 2 * o_dim * m
    if pad:
        w_from_re = jnp.pad(w_from_re, ((0, 0), (0, pad)))
        w_from_im = jnp.pad(w_from_im, ((0, 0), (0, pad)))
    return w_from_re.astype(jnp.float32), w_from_im.astype(jnp.float32)


def prepare_params(w_y, w_x, ff_params):
    """Pack the spectral weights once; reuse across all forward calls."""
    wy_re, wy_im = pack_spectral_weight(w_y)
    wx_re, wx_im = pack_spectral_weight(w_x)
    return {"wy_re": wy_re, "wy_im": wy_im,
            "wx_re": wx_re, "wx_im": wx_im,
            "ff": tuple(ff_params)}


# ---------------------------------------------------------------------------
# Cheap real/imag slab packing (no stack, no 5-D transpose, no concat)
# ---------------------------------------------------------------------------
def _pack_rows_modes_last(xf):
    """xf: (B, I, S, M) complex -> (xr, xi), each (B*S, I*M) f32, cols (i-major, m-minor)."""
    b, i_dim, s, m = xf.shape
    xr = jnp.transpose(jnp.real(xf), (0, 2, 1, 3)).reshape(b * s, i_dim * m)
    xi = jnp.transpose(jnp.imag(xf), (0, 2, 1, 3)).reshape(b * s, i_dim * m)
    return xr.astype(jnp.float32), xi.astype(jnp.float32)


def _pack_rows_modes_first(xf):
    """xf: (B, I, M, S) complex -> (xr, xi), each (B*S, I*M) f32, cols (i-major, m-minor)."""
    b, i_dim, m, s = xf.shape
    xr = jnp.transpose(jnp.real(xf), (0, 3, 1, 2)).reshape(b * s, i_dim * m)
    xi = jnp.transpose(jnp.imag(xf), (0, 3, 1, 2)).reshape(b * s, i_dim * m)
    return xr.astype(jnp.float32), xi.astype(jnp.float32)


def _unpack_modes_last(y, b, s, m, o_dim):
    """(B*S, >=2*O*M) -> complex64 (B, O, S, M)."""
    y = y[:b * s, :2 * o_dim * m].reshape(b, s, 2, o_dim, m)
    c = (y[:, :, 0] + 1j * y[:, :, 1]).astype(jnp.complex64)   # (B, S, O, M)
    return jnp.transpose(c, (0, 2, 1, 3))


def _unpack_modes_first(y, b, s, m, o_dim):
    """(B*S, >=2*O*M) -> complex64 (B, O, M, S)."""
    y = y[:b * s, :2 * o_dim * m].reshape(b, s, 2, o_dim, m)
    c = (y[:, :, 0] + 1j * y[:, :, 1]).astype(jnp.complex64)   # (B, S, O, M)
    return jnp.transpose(c, (0, 2, 3, 1))


# ---------------------------------------------------------------------------
# SpectralConv2d forward (regular-grid path: x_in = x_out = None, ff=True)
# ---------------------------------------------------------------------------
def spectral_conv2d(x, packed, *, out_dim, m1, m2, s1, s2, ff=True):
    """x: (B, I, s1, s2) f32. packed: output of prepare_params."""
    B, I, S1, S2 = x.shape
    O = out_dim

    # ---- forward FFTs (XLA; no Pallas FFT primitive) ----
    x_fty = jnp.fft.rfft(x, axis=-1)                       # (B, I, S1, S2//2+1)
    xr_y, xi_y = _pack_rows_modes_last(x_fty[:, :, :, :m2])
    x_ftx = jnp.fft.rfft(x, axis=-2)                       # (B, I, S1//2+1, S2)
    xr_x, xi_x = _pack_rows_modes_first(x_ftx[:, :, :m1, :])

    groups = [(xr_y, xi_y, packed["wy_re"], packed["wy_im"]),
              (xr_x, xi_x, packed["wx_re"], packed["wx_im"])]
    if xr_y.shape[0] == xr_x.shape[0]:
        y_out, x_out = spectral_mode_matmul(groups)        # single fused pallas_call
    else:
        (y_out,) = spectral_mode_matmul(groups[:1])
        (x_out,) = spectral_mode_matmul(groups[1:])

    # ---- y direction inverse ----
    out_modes_y = _unpack_modes_last(y_out, B, S1, m2, O)  # (B, O, S1, m2) c64
    out_ft_y = jnp.pad(out_modes_y, ((0, 0), (0, 0), (0, 0), (0, s2 // 2 + 1 - m2)))
    # NOTE: n=s1 on dim=-1 mirrors the reference module verbatim
    # (torch.fft.irfft(out_ft, n=self.s1, dim=-1)); default norm='backward' both sides.
    xy = jnp.fft.irfft(out_ft_y, n=s1, axis=-1)

    # ---- x direction inverse ----
    out_modes_x = _unpack_modes_first(x_out, B, S2, m1, O)  # (B, O, m1, S2) c64
    out_ft_x = jnp.pad(out_modes_x, ((0, 0), (0, 0), (0, s1 // 2 + 1 - m1), (0, 0)))
    xx = jnp.fft.irfft(out_ft_x, n=s2, axis=-2)

    # ---- fused (xx + xy) + backcast feed-forward (eval: dropout=0, no LN) ----
    if ff:
        w1, b1, w2, b2 = packed["ff"]
        return fused_add_feedforward(xy, xx, w1, b1, w2, b2)
    return xx + xy


# ---------------------------------------------------------------------------
# Pure-JAX reference (for correctness validation only)
# ---------------------------------------------------------------------------
def reference_forward(x, w_y, w_x, ff_params, *, m1, m2, s1, s2):
    hp = jax.lax.Precision.HIGHEST
    B, I, S1, S2 = x.shape
    O = w_y.shape[1]
    wyc = w_y[..., 0] + 1j * w_y[..., 1]
    wxc = w_x[..., 0] + 1j * w_x[..., 1]

    x_fty = jnp.fft.rfft(x, axis=-1)
    out_ft = jnp.zeros((B, O, s1, s2 // 2 + 1), jnp.complex64)
    out_ft = out_ft.at[:, :, :, :m2].set(
        jnp.einsum('bixy,ioy->boxy', x_fty[:, :, :, :m2], wyc, precision=hp))
    xy = jnp.fft.irfft(out_ft, n=s1, axis=-1)

    x_ftx = jnp.fft.rfft(x, axis=-2)
    out_ft2 = jnp.zeros((B, O, s1 // 2 + 1, s2), jnp.complex64)
    out_ft2 = out_ft2.at[:, :, :m1, :].set(
        jnp.einsum('bixy,iox->boxy', x_ftx[:, :, :m1, :], wxc, precision=hp))
    xx = jnp.fft.irfft(out_ft2, n=s2, axis=-2)

    out = xx + xy
    w1, b1, w2, b2 = ff_params
    h = jnp.einsum('hc,bcxy->bhxy', w1, out, precision=hp) + b1[:, 0][None, :, None, None]
    h = jnp.maximum(h, 0.0)
    return jnp.einsum('oh,bhxy->boxy', w2, h, precision=hp) + b2[:, 0][None, :, None, None]


# ---------------------------------------------------------------------------
# Deterministic parameter init + smoke test
# ---------------------------------------------------------------------------
def xavier_normal(key, shape):
    # torch.nn.init.xavier_normal_ semantics for >2D tensors
    rf = 1
    for d in shape[2:]:
        rf *= d
    fan_in = shape[1] * rf
    fan_out = shape[0] * rf
    std = (2.0 / (fan_in + fan_out)) ** 0.5
    return std * jax.random.normal(key, shape, dtype=jnp.float32)


if __name__ == "__main__":
    B, in_dim, out_dim = 2, 4, 4
    s1 = s2 = 16
    m1 = m2 = 8
    factor = 2                     # FeedForward(out_dim, factor, ..., n_ff_layers=2)
    hidden = out_dim * factor

    key = jax.random.PRNGKey(0)
    keys = jax.random.split(key, 8)

    # fourier_weight[0] ~ (in_dim, out_dim, m2, 2), fourier_weight[1] ~ (..., m1, 2)
    w_y = xavier_normal(keys[0], (in_dim, out_dim, m2, 2))
    w_x = xavier_normal(keys[1], (in_dim, out_dim, m1, 2))

    # backcast_ff: Linear(out_dim -> hidden) + ReLU, Linear(hidden -> out_dim),
    # stored in torch Linear layout (out_features, in_features).
    w1 = 0.1 * jax.random.normal(keys[2], (hidden, out_dim), jnp.float32)
    b1 = 0.1 * jax.random.normal(keys[3], (hidden, 1), jnp.float32)
    w2 = 0.1 * jax.random.normal(keys[4], (out_dim, hidden), jnp.float32)
    b2 = 0.1 * jax.random.normal(keys[5], (out_dim, 1), jnp.float32)

    x = jax.random.normal(keys[6], (B, in_dim, s1, s2), jnp.float32)

    # Weight packing hoisted out of the per-step forward (done once here).
    packed = prepare_params(w_y, w_x, (w1, b1, w2, b2))

    fwd = jax.jit(functools.partial(spectral_conv2d, out_dim=out_dim,
                                    m1=m1, m2=m2, s1=s1, s2=s2, ff=True))
    out = fwd(x, packed)
    jax.block_until_ready(out)
    assert out.shape == (B, out_dim, s1, s2), out.shape
    assert out.dtype == jnp.float32

    # Validate against the pure-JAX reference (loose tolerance: MXU f32 matmuls
    # may use bf16 passes at default precision).
    ref = reference_forward(x, w_y, w_x, (w1, b1, w2, b2), m1=m1, m2=m2, s1=s1, s2=s2)
    jax.block_until_ready(ref)
    assert bool(jnp.allclose(out, ref, rtol=2e-2, atol=2e-2)), \
        float(jnp.max(jnp.abs(out - ref)))

    print("KERNEL_OK")
</pallas_src>

<mosaic_0001>
module attributes {stable_mosaic.version = 11 : i64} {
  func.func @_dual_matmul_kernel(%arg0: i32, %arg1: memref<32x32xf32, #tpu.memory_space<vmem>>, %arg2: memref<32x32xf32, #tpu.memory_space<vmem>>, %arg3: memref<32x128xf32, #tpu.memory_space<vmem>>, %arg4: memref<32x128xf32, #tpu.memory_space<vmem>>, %arg5: memref<32x32xf32, #tpu.memory_space<vmem>>, %arg6: memref<32x32xf32, #tpu.memory_space<vmem>>, %arg7: memref<32x128xf32, #tpu.memory_space<vmem>>, %arg8: memref<32x128xf32, #tpu.memory_space<vmem>>, %arg9: memref<32x128xf32, #tpu.memory_space<vmem>>, %arg10: memref<32x128xf32, #tpu.memory_space<vmem>>) attributes {dimension_semantics = [#tpu.dimension_semantics<parallel>], iteration_bounds = array<i64: 1>, scalar_prefetch = 0 : i64, scratch_operands = 0 : i64, tpu.core_type = #tpu.core_type<tc>, window_params = [{transform_indices = @transform_0, window_bounds = array<i64: 32, 32>}, {transform_indices = @transform_1, window_bounds = array<i64: 32, 32>}, {pipeline_mode = #tpu.pipeline_mode<synchronous>, transform_indices = @transform_2, window_bounds = array<i64: 32, 128>}, {pipeline_mode = #tpu.pipeline_mode<synchronous>, transform_indices = @transform_3, window_bounds = array<i64: 32, 128>}, {transform_indices = @transform_4, window_bounds = array<i64: 32, 32>}, {transform_indices = @transform_5, window_bounds = array<i64: 32, 32>}, {pipeline_mode = #tpu.pipeline_mode<synchronous>, transform_indices = @transform_6, window_bounds = array<i64: 32, 128>}, {pipeline_mode = #tpu.pipeline_mode<synchronous>, transform_indices = @transform_7, window_bounds = array<i64: 32, 128>}, {transform_indices = @transform_8, window_bounds = array<i64: 32, 128>}, {transform_indices = @transform_9, window_bounds = array<i64: 32, 128>}]} {
    %c0 = arith.constant 0 : index
    %c0_0 = arith.constant 0 : index
    %0 = vector.load %arg1[%c0, %c0_0] : memref<32x32xf32, #tpu.memory_space<vmem>>, vector<32x32xf32>
    %c0_1 = arith.constant 0 : index
    %c0_2 = arith.constant 0 : index
    %1 = vector.load %arg3[%c0_1, %c0_2] : memref<32x128xf32, #tpu.memory_space<vmem>>, vector<32x128xf32>
    %cst = arith.constant dense<0.000000e+00> : vector<32x128xf32>
    %2 = tpu.matmul %0, %1, %cst {dimension_numbers = #tpu.dot_dimension_numbers<[1], [0], [0], [1], [0, 0, 1, 1], [], []>} : vector<32x32xf32>, vector<32x128xf32>, vector<32x128xf32> -> vector<32x128xf32>
    %c0_3 = arith.constant 0 : index
    %c0_4 = arith.constant 0 : index
    %3 = vector.load %arg2[%c0_3, %c0_4] : memref<32x32xf32, #tpu.memory_space<vmem>>, vector<32x32xf32>
    %c0_5 = arith.constant 0 : index
    %c0_6 = arith.constant 0 : index
    %4 = vector.load %arg4[%c0_5, %c0_6] : memref<32x128xf32, #tpu.memory_space<vmem>>, vector<32x128xf32>
    %cst_7 = arith.constant dense<0.000000e+00> : vector<32x128xf32>
    %5 = tpu.matmul %3, %4, %cst_7 {dimension_numbers = #tpu.dot_dimension_numbers<[1], [0], [0], [1], [0, 0, 1, 1], [], []>} : vector<32x32xf32>, vector<32x128xf32>, vector<32x128xf32> -> vector<32x128xf32>
    %6 = arith.addf %2, %5 : vector<32x128xf32>
    %c0_8 = arith.constant 0 : index
    %c0_9 = arith.constant 0 : index
    %7 = vector.load %arg9[%c0_8, %c0_9] : memref<32x128xf32, #tpu.memory_space<vmem>>, vector<32x128xf32>
    tpu.vector_store %arg9[%c0_8, %c0_9], %6 {strides = array<i32>} : memref<32x128xf32, #tpu.memory_space<vmem>>, vector<32x128xf32>,
    %c0_10 = arith.constant 0 : index
    %c0_11 = arith.constant 0 : index
    %8 = vector.load %arg5[%c0_10, %c0_11] : memref<32x32xf32, #tpu.memory_space<vmem>>, vector<32x32xf32>
    %c0_12 = arith.constant 0 : index
    %c0_13 = arith.constant 0 : index
    %9 = vector.load %arg7[%c0_12, %c0_13] : memref<32x128xf32, #tpu.memory_space<vmem>>, vector<32x128xf32>
    %cst_14 = arith.constant dense<0.000000e+00> : vector<32x128xf32>
    %10 = tpu.matmul %8, %9, %cst_14 {dimension_numbers = #tpu.dot_dimension_numbers<[1], [0], [0], [1], [0, 0, 1, 1], [], []>} : vector<32x32xf32>, vector<32x128xf32>, vector<32x128xf32> -> vector<32x128xf32>
    %c0_15 = arith.constant 0 : index
    %c0_16 = arith.constant 0 : index
    %11 = vector.load %arg6[%c0_15, %c0_16] : memref<32x32xf32, #tpu.memory_space<vmem>>, vector<32x32xf32>
    %c0_17 = arith.constant 0 : index
    %c0_18 = arith.constant 0 : index
    %12 = vector.load %arg8[%c0_17, %c0_18] : memref<32x128xf32, #tpu.memory_space<vmem>>, vector<32x128xf32>
    %cst_19 = arith.constant dense<0.000000e+00> : vector<32x128xf32>
    %13 = tpu.matmul %11, %12, %cst_19 {dimension_numbers = #tpu.dot_dimension_numbers<[1], [0], [0], [1], [0, 0, 1, 1], [], []>} : vector<32x32xf32>, vector<32x128xf32>, vector<32x128xf32> -> vector<32x128xf32>
    %14 = arith.addf %10, %13 : vector<32x128xf32>
    %c0_20 = arith.constant 0 : index
    %c0_21 = arith.constant 0 : index
    %15 = vector.load %arg10[%c0_20, %c0_21] : memref<32x128xf32, #tpu.memory_space<vmem>>, vector<32x128xf32>
    tpu.vector_store %arg10[%c0_20, %c0_21], %14 {strides = array<i32>} : memref<32x128xf32, #tpu.memory_space<vmem>>, vector<32x128xf32>,
    return
  }
  func.func @transform_0(%arg0: i32) -> (i32, i32) {
    %c0_i32 = arith.constant 0 : i32
    %c0_i32_0 = arith.constant 0 : i32
    return %arg0, %c0_i32 : i32, i32
  }
  func.func @transform_1(%arg0: i32) -> (i32, i32) {
    %c0_i32 = arith.constant 0 : i32
    %c0_i32_0 = arith.constant 0 : i32
    return %arg0, %c0_i32 : i32, i32
  }
  func.func @transform_2(%arg0: i32) -> (i32, i32) {
    %c0_i32 = arith.constant 0 : i32
    %c0_i32_0 = arith.constant 0 : i32
    %c0_i32_1 = arith.constant 0 : i32
    return %c0_i32, %c0_i32_0 : i32, i32
  }
  func.func @transform_3(%arg0: i32) -> (i32, i32) {
    %c0_i32 = arith.constant 0 : i32
    %c0_i32_0 = arith.constant 0 : i32
    %c0_i32_1 = arith.constant 0 : i32
    return %c0_i32, %c0_i32_0 : i32, i32
  }
  func.func @transform_4(%arg0: i32) -> (i32, i32) {
    %c0_i32 = arith.constant 0 : i32
    %c0_i32_0 = arith.constant 0 : i32
    return %arg0, %c0_i32 : i32, i32
  }
  func.func @transform_5(%arg0: i32) -> (i32, i32) {
    %c0_i32 = arith.constant 0 : i32
    %c0_i32_0 = arith.constant 0 : i32
    return %arg0, %c0_i32 : i32, i32
  }
  func.func @transform_6(%arg0: i32) -> (i32, i32) {
    %c0_i32 = arith.constant 0 : i32
    %c0_i32_0 = arith.constant 0 : i32
    %c0_i32_1 = arith.constant 0 : i32
    return %c0_i32, %c0_i32_0 : i32, i32
  }
  func.func @transform_7(%arg0: i32) -> (i32, i32) {
    %c0_i32 = arith.constant 0 : i32
    %c0_i32_0 = arith.constant 0 : i32
    %c0_i32_1 = arith.constant 0 : i32
    return %c0_i32, %c0_i32_0 : i32, i32
  }
  func.func @transform_8(%arg0: i32) -> (i32, i32) {
    %c0_i32 = arith.constant 0 : i32
    %c0_i32_0 = arith.constant 0 : i32
    return %arg0, %c0_i32 : i32, i32
  }
  func.func @transform_9(%arg0: i32) -> (i32, i32) {
    %c0_i32 = arith.constant 0 : i32
    %c0_i32_0 = arith.constant 0 : i32
    return %arg0, %c0_i32 : i32, i32
  }
}

module attributes {stable_mosaic.version = 11 : i64} {
  func.func @_ff_kernel(%arg0: i32, %arg1: i32, %arg2: memref<1x4x256xf32, #tpu.memory_space<vmem>>, %arg3: memref<1x4x256xf32, #tpu.memory_space<vmem>>, %arg4: memref<8x4xf32, #tpu.memory_space<vmem>>, %arg5: memref<8x1xf32, #tpu.memory_space<vmem>>, %arg6: memref<4x8xf32, #tpu.memory_space<vmem>>, %arg7: memref<4x1xf32, #tpu.memory_space<vmem>>, %arg8: memref<1x4x256xf32, #tpu.memory_space<vmem>>) attributes {dimension_semantics = [#tpu.dimension_semantics<parallel>, #tpu.dimension_semantics<parallel>], iteration_bounds = array<i64: 2, 1>, scalar_prefetch = 0 : i64, scratch_operands = 0 : i64, tpu.core_type = #tpu.core_type<tc>, window_params = [{transform_indices = @transform_0, window_bounds = array<i64: 1, 4, 256>}, {transform_indices = @transform_1, window_bounds = array<i64: 1, 4, 256>}, {pipeline_mode = #tpu.pipeline_mode<synchronous>, transform_indices = @transform_2, window_bounds = array<i64: 8, 4>}, {pipeline_mode = #tpu.pipeline_mode<synchronous>, transform_indices = @transform_3, window_bounds = array<i64: 8, 1>}, {pipeline_mode = #tpu.pipeline_mode<synchronous>, transform_indices = @transform_4, window_bounds = array<i64: 4, 8>}, {pipeline_mode = #tpu.pipeline_mode<synchronous>, transform_indices = @transform_5, window_bounds = array<i64: 4, 1>}, {transform_indices = @transform_6, window_bounds = array<i64: 1, 4, 256>}]} {
    %c0 = arith.constant 0 : index
    %c0_0 = arith.constant 0 : index
    %c0_1 = arith.constant 0 : index
    %0 = vector.load %arg2[%c0, %c0_0, %c0_1] : memref<1x4x256xf32, #tpu.memory_space<vmem>>, vector<1x4x256xf32>
    %1 = vector.shape_cast %0 : vector<1x4x256xf32> to vector<4x256xf32>
    %c0_2 = arith.constant 0 : index
    %c0_3 = arith.constant 0 : index
    %c0_4 = arith.constant 0 : index
    %2 = vector.load %arg3[%c0_2, %c0_3, %c0_4] : memref<1x4x256xf32, #tpu.memory_space<vmem>>, vector<1x4x256xf32>
    %3 = vector.shape_cast %2 : vector<1x4x256xf32> to vector<4x256xf32>
    %4 = arith.addf %1, %3 : vector<4x256xf32>
    %c0_5 = arith.constant 0 : index
    %c0_6 = arith.constant 0 : index
    %5 = vector.load %arg4[%c0_5, %c0_6] : memref<8x4xf32, #tpu.memory_space<vmem>>, vector<8x4xf32>
    %cst = arith.constant dense<0.000000e+00> : vector<8x256xf32>
    %6 = tpu.matmul %5, %4, %cst {dimension_numbers = #tpu.dot_dimension_numbers<[1], [0], [0], [1], [0, 0, 1, 1], [], []>} : vector<8x4xf32>, vector<4x256xf32>, vector<8x256xf32> -> vector<8x256xf32>
    %c0_7 = arith.constant 0 : index
    %c0_8 = arith.constant 0 : index
    %7 = vector.load %arg5[%c0_7, %c0_8] : memref<8x1xf32, #tpu.memory_space<vmem>>, vector<8x1xf32>
    %8 = vector.broadcast %7 : vector<8x1xf32> to vector<8x256xf32>
    %9 = arith.addf %6, %8 : vector<8x256xf32>
    %cst_9 = arith.constant 0.000000e+00 : f32
    %10 = vector.broadcast %cst_9 : f32 to vector<8x256xf32>
    %11 = arith.maximumf %9, %10 : vector<8x256xf32>
    %c0_10 = arith.constant 0 : index
    %c0_11 = arith.constant 0 : index
    %12 = vector.load %arg6[%c0_10, %c0_11] : memref<4x8xf32, #tpu.memory_space<vmem>>, vector<4x8xf32>
    %cst_12 = arith.constant dense<0.000000e+00> : vector<4x256xf32>
    %13 = tpu.matmul %12, %11, %cst_12 {dimension_numbers = #tpu.dot_dimension_numbers<[1], [0], [0], [1], [0, 0, 1, 1], [], []>} : vector<4x8xf32>, vector<8x256xf32>, vector<4x256xf32> -> vector<4x256xf32>
    %c0_13 = arith.constant 0 : index
    %c0_14 = arith.constant 0 : index
    %14 = vector.load %arg7[%c0_13, %c0_14] : memref<4x1xf32, #tpu.memory_space<vmem>>, vector<4x1xf32>
    %15 = vector.broadcast %14 : vector<4x1xf32> to vector<4x256xf32>
    %16 = arith.addf %13, %15 : vector<4x256xf32>
    %c0_15 = arith.constant 0 : index
    %c0_16 = arith.constant 0 : index
    %c0_17 = arith.constant 0 : index
    %17 = vector.load %arg8[%c0_15, %c0_16, %c0_17] : memref<1x4x256xf32, #tpu.memory_space<vmem>>, vector<1x4x256xf32>
    %18 = vector.shape_cast %17 : vector<1x4x256xf32> to vector<4x256xf32>
    %19 = vector.shape_cast %16 : vector<4x256xf32> to vector<1x4x256xf32>
    tpu.vector_store %arg8[%c0_15, %c0_16, %c0_17], %19 {strides = array<i32>} : memref<1x4x256xf32, #tpu.memory_space<vmem>>, vector<1x4x256xf32>,
    return
  }
  func.func @transform_0(%arg0: i32, %arg1: i32) -> (i32, i32, i32) {
    %c0_i32 = arith.constant 0 : i32
    %c0_i32_0 = arith.constant 0 : i32
    return %arg0, %c0_i32, %arg1 : i32, i32, i32
  }
  func.func @transform_1(%arg0: i32, %arg1: i32) -> (i32, i32, i32) {
    %c0_i32 = arith.constant 0 : i32
    %c0_i32_0 = arith.constant 0 : i32
    return %arg0, %c0_i32, %arg1 : i32, i32, i32
  }
  func.func @transform_2(%arg0: i32, %arg1: i32) -> (i32, i32) {
    %c0_i32 = arith.constant 0 : i32
    %c0_i32_0 = arith.constant 0 : i32
    %c0_i32_1 = arith.constant 0 : i32
    return %c0_i32, %c0_i32_0 : i32, i32
  }
  func.func @transform_3(%arg0: i32, %arg1: i32) -> (i32, i32) {
    %c0_i32 = arith.constant 0 : i32
    %c0_i32_0 = arith.constant 0 : i32
    %c0_i32_1 = arith.constant 0 : i32
    return %c0_i32, %c0_i32_0 : i32, i32
  }
  func.func @transform_4(%arg0: i32, %arg1: i32) -> (i32, i32) {
    %c0_i32 = arith.constant 0 : i32
    %c0_i32_0 = arith.constant 0 : i32
    %c0_i32_1 = arith.constant 0 : i32
    return %c0_i32, %c0_i32_0 : i32, i32
  }
  func.func @transform_5(%arg0: i32, %arg1: i32) -> (i32, i32) {
    %c0_i32 = arith.constant 0 : i32
    %c0_i32_0 = arith.constant 0 : i32
    %c0_i32_1 = arith.constant 0 : i32
    return %c0_i32, %c0_i32_0 : i32, i32
  }
  func.func @transform_6(%arg0: i32, %arg1: i32) -> (i32, i32, i32) {
    %c0_i32 = arith.constant 0 : i32
    %c0_i32_0 = arith.constant 0 : i32
    return %arg0, %c0_i32, %arg1 : i32, i32, i32
  }
}

</mosaic_0001>

<llo_original>
// kernel: reverse.6
$region0: #{reverse.6}
  %s0 = inlined_call_operand.vmem [shape: f32[2,4,16,7], index: 0, kind: input, shape index: {}]
  %s1 = inlined_call_operand.vmem [shape: f32[2,4,16,7], index: 1, kind: output, shape index: {}]
  %v2 = vlaneseq
  %v3 = vsub.s32 6, %v2
  %4 = vset.pattern.permute.xlu0 %v3
  $region1: #{reverse.6} parent=0
    #allocation0 [shape = 'u8[65536]{0}', space=vmem, size = 0x10000, scoped, tag = 'operand span for operand 0']
    #allocation1 [shape = 'u8[65536]{0}', space=vmem, size = 0x10000, scoped, tag = 'operand span for operand 1']
    // Predicated region
    $region2: #{reverse.6} parent=1 // pred_check
      _
    $region3: #{reverse.6} parent=1 // pred_check_branch
      %6 = sbr.rel (0) target = $region5
    $region4: #{reverse.6} parent=1 // pred_region
      // Predicated region
      $region6: #{reverse.6} parent=4 // pred_check
        _
      $region7: #{reverse.6} parent=4 // pred_check_branch
        %8 = sbr.rel (0) target = $region9
      $region8: #{reverse.6} parent=4 // pred_region
        // Predicated region
        $region21: #{reverse.6} parent=8 // pred_check
          _
        $region22: #{reverse.6} parent=8 // pred_check_branch
          %54 = sbr.rel (0) target = $region24
        $region23: #{reverse.6} parent=8 // pred_region
          loop: start=0, step=1, limit=1
          $region25: #{reverse.6} parent=23 // loop_pre_header
            _
          $region26: #{reverse.6} parent=23 // loop_header
            %s56 = sphi 0, %s60
            %p57 = scmp.ge.s32.totalorder %s56, 1
            %s61 = sphi %s0, %s0
            %s62 = sphi [#allocation0], [#allocation0]
          $region27: #{reverse.6} parent=23 // loop_header_branch
            %59 = sbr.rel (%p57) target = $region31
          $region28: #{reverse.6} parent=23 // loop_body
            %v63 = vld [vmem:[%s61] sm:$0xff]
            %64 = vst [vmem:[%s62] sm:$0xff] %v63
            %v65 = vld [vmem:[%s61 + $0x8] sm:$0xff]
            %66 = vst [vmem:[%s62 + $0x8] sm:$0xff] %v65
            %v67 = vld [vmem:[%s61 + $0x10] sm:$0xff]
            %68 = vst [vmem:[%s62 + $0x10] sm:$0xff] %v67
            %v69 = vld [vmem:[%s61 + $0x18] sm:$0xff]
            %70 = vst [vmem:[%s62 + $0x18] sm:$0xff] %v69
            %v71 = vld [vmem:[%s61 + $0x20] sm:$0xff]
            %72 = vst [vmem:[%s62 + $0x20] sm:$0xff] %v71
            %v73 = vld [vmem:[%s61 + $0x28] sm:$0xff]
            %74 = vst [vmem:[%s62 + $0x28] sm:$0xff] %v73
            %v75 = vld [vmem:[%s61 + $0x30] sm:$0xff]
            %76 = vst [vmem:[%s62 + $0x30] sm:$0xff] %v75
            %v77 = vld [vmem:[%s61 + $0x38] sm:$0xff]
            %78 = vst [vmem:[%s62 + $0x38] sm:$0xff] %v77
            %v79 = vld [vmem:[%s61 + $0x40] sm:$0xff]
            %80 = vst [vmem:[%s62 + $0x40] sm:$0xff] %v79
            %v81 = vld [vmem:[%s61 + $0x48] sm:$0xff]
            %82 = vst [vmem:[%s62 + $0x48] sm:$0xff] %v81
            %v83 = vld [vmem:[%s61 + $0x50] sm:$0xff]
            %84 = vst [vmem:[%s62 + $0x50] sm:$0xff] %v83
            %v85 = vld [vmem:[%s61 + $0x58] sm:$0xff]
            %86 = vst [vmem:[%s62 + $0x58] sm:$0xff] %v85
            %v87 = vld [vmem:[%s61 + $0x60] sm:$0xff]
            %88 = vst [vmem:[%s62 + $0x60] sm:$0xff] %v87
            %v89 = vld [vmem:[%s61 + $0x68] sm:$0xff]
            %90 = vst [vmem:[%s62 + $0x68] sm:$0xff] %v89
            %v91 = vld [vmem:[%s61 + $0x70] sm:$0xff]
            %92 = vst [vmem:[%s62 + $0x70] sm:$0xff] %v91
            %v93 = vld [vmem:[%s61 + $0x78] sm:$0xff]
            %94 = vst [vmem:[%s62 + $0x78] sm:$0xff] %v93
          $region29: #{reverse.6} parent=23 // loop_footer
            %s60 = sadd.s32 1, %s56
          $region30: #{reverse.6} parent=23 // loop_footer_branch
            %55 = sbr.rel target = $region26
          $region31: #{reverse.6} parent=23 // loop_exit
            _
        $region24: #{reverse.6} parent=8 // pred_fallthru
          _
        // Predicated region
        $region32: #{reverse.6} parent=8 // pred_check
          _
        $region33: #{reverse.6} parent=8 // pred_check_branch
          %96 = sbr.rel target = $region35
        $region34: #{reverse.6} parent=8 // pred_region
          _
        $region35: #{reverse.6} parent=8 // pred_fallthru
          _
      $region9: #{reverse.6} parent=4 // pred_fallthru
        _
      // Predicated region
      $region10: #{reverse.6} parent=4 // pred_check
        _
      $region11: #{reverse.6} parent=4 // pred_check_branch
        %10 = sbr.rel target = $region13
      $region12: #{reverse.6} parent=4 // pred_region
        %s12 = ssub.s32 256, 1
        loop: start=0, step=1, limit=1
        $region14: #{reverse.6} parent=12 // loop_pre_header
          _
        $region15: #{reverse.6} parent=12 // loop_header
          %s14 = sphi 0, %s18
          %p15 = scmp.ge.s32.totalorder %s14, 1
          %s19 = sphi %s0, %s0
          %s20 = sphi [#allocation0], [#allocation0]
        $region16: #{reverse.6} parent=12 // loop_header_branch
          %17 = sbr.rel (%p15) target = $region20
        $region17: #{reverse.6} parent=12 // loop_body
          %v21 = vld [vmem:[%s19] sm:%s12]
          %22 = vst [vmem:[%s20] sm:%s12] %v21
          %v23 = vld [vmem:[%s19 + $0x8] sm:%s12]
          %24 = vst [vmem:[%s20 + $0x8] sm:%s12] %v23
          %v25 = vld [vmem:[%s19 + $0x10] sm:%s12]
          %26 = vst [vmem:[%s20 + $0x10] sm:%s12] %v25
          %v27 = vld [vmem:[%s19 + $0x18] sm:%s12]
          %28 = vst [vmem:[%s20 + $0x18] sm:%s12] %v27
          %v29 = vld [vmem:[%s19 + $0x20] sm:%s12]
          %30 = vst [vmem:[%s20 + $0x20] sm:%s12] %v29
          %v31 = vld [vmem:[%s19 + $0x28] sm:%s12]
          %32 = vst [vmem:[%s20 + $0x28] sm:%s12] %v31
          %v33 = vld [vmem:[%s19 + $0x30] sm:%s12]
          %34 = vst [vmem:[%s20 + $0x30] sm:%s12] %v33
          %v35 = vld [vmem:[%s19 + $0x38] sm:%s12]
          %36 = vst [vmem:[%s20 + $0x38] sm:%s12] %v35
          %v37 = vld [vmem:[%s19 + $0x40] sm:%s12]
          %38 = vst [vmem:[%s20 + $0x40] sm:%s12] %v37
          %v39 = vld [vmem:[%s19 + $0x48] sm:%s12]
          %40 = vst [vmem:[%s20 + $0x48] sm:%s12] %v39
          %v41 = vld [vmem:[%s19 + $0x50] sm:%s12]
          %42 = vst [vmem:[%s20 + $0x50] sm:%s12] %v41
          %v43 = vld [vmem:[%s19 + $0x58] sm:%s12]
          %44 = vst [vmem:[%s20 + $0x58] sm:%s12] %v43
          %v45 = vld [vmem:[%s19 + $0x60] sm:%s12]
          %46 = vst [vmem:[%s20 + $0x60] sm:%s12] %v45
          %v47 = vld [vmem:[%s19 + $0x68] sm:%s12]
          %48 = vst [vmem:[%s20 + $0x68] sm:%s12] %v47
          %v49 = vld [vmem:[%s19 + $0x70] sm:%s12]
          %50 = vst [vmem:[%s20 + $0x70] sm:%s12] %v49
          %v51 = vld [vmem:[%s19 + $0x78] sm:%s12]
          %52 = vst [vmem:[%s20 + $0x78] sm:%s12] %v51
        $region18: #{reverse.6} parent=12 // loop_footer
          %s18 = sadd.s32 1, %s14
        $region19: #{reverse.6} parent=12 // loop_footer_branch
          %13 = sbr.rel target = $region15
        $region20: #{reverse.6} parent=12 // loop_exit
          _
      $region13: #{reverse.6} parent=4 // pred_fallthru
        _
    $region5: #{reverse.6} parent=1 // pred_fallthru
      _
    %97 = vnop
    %v98 = vld [vmem:[#allocation0] sm:$0xff]
    %99 = vperm.xlu0 %4, %v98
    %v100 = vpop.permute.xlu0 %99
    %101 = vst [vmem:[#allocation1] sm:$0xff] %v100
    %s102 = scalar_lea.vmem [#allocation1], 8
    %s103 = scalar_lea.vmem [#allocation0], 8
    %v104 = vld [vmem:[%s103] sm:$0xff]
    %105 = vperm.xlu0 %4, %v104
    %v106 = vpop.permute.xlu0 %105
    %107 = vst [vmem:[%s102] sm:$0xff] %v106
    %s108 = scalar_lea.vmem [#allocation1], 16
    %s109 = scalar_lea.vmem [#allocation0], 16
    %v110 = vld [vmem:[%s109] sm:$0xff]
    %111 = vperm.xlu0 %4, %v110
    %v112 = vpop.permute.xlu0 %111
    %113 = vst [vmem:[%s108] sm:$0xff] %v112
    %s114 = scalar_lea.vmem %s108, 8 [#allocation1]
    %s115 = scalar_lea.vmem %s109, 8 [#allocation0]
    %v116 = vld [vmem:[%s115] sm:$0xff]
    %117 = vperm.xlu0 %4, %v116
    %v118 = vpop.permute.xlu0 %117
    %119 = vst [vmem:[%s114] sm:$0xff] %v118
    %s120 = scalar_lea.vmem [#allocation1], 32
    %s121 = scalar_lea.vmem [#allocation0], 32
    %v122 = vld [vmem:[%s121] sm:$0xff]
    %123 = vperm.xlu0 %4, %v122
    %v124 = vpop.permute.xlu0 %123
    %125 = vst [vmem:[%s120] sm:$0xff] %v124
    %s126 = scalar_lea.vmem %s120, 8 [#allocation1]
    %s127 = scalar_lea.vmem %s121, 8 [#allocation0]
    %v128 = vld [vmem:[%s127] sm:$0xff]
    %129 = vperm.xlu0 %4, %v128
    %v130 = vpop.permute.xlu0 %129
    %131 = vst [vmem:[%s126] sm:$0xff] %v130
    %s132 = scalar_lea.vmem [#allocation1], 48
    %s133 = scalar_lea.vmem [#allocation0], 48
    %v134 = vld [vmem:[%s133] sm:$0xff]
    %135 = vperm.xlu0 %4, %v134
    %v136 = vpop.permute.xlu0 %135
    %137 = vst [vmem:[%s132] sm:$0xff] %v136
    %s138 = scalar_lea.vmem %s132, 8 [#allocation1]
    %s139 = scalar_lea.vmem %s133, 8 [#allocation0]
    %v140 = vld [vmem:[%s139] sm:$0xff]
    %141 = vperm.xlu0 %4, %v140
    %v142 = vpop.permute.xlu0 %141
    %143 = vst [vmem:[%s138] sm:$0xff] %v142
    %s144 = scalar_lea.vmem [#allocation1], 64
    %s145 = scalar_lea.vmem [#allocation0], 64
    %v146 = vld [vmem:[%s145] sm:$0xff]
    %147 = vperm.xlu0 %4, %v146
    %v148 = vpop.permute.xlu0 %147
    %149 = vst [vmem:[%s144] sm:$0xff] %v148
    %s150 = scalar_lea.vmem %s144, 8 [#allocation1]
    %s151 = scalar_lea.vmem %s145, 8 [#allocation0]
    %v152 = vld [vmem:[%s151] sm:$0xff]
    %153 = vperm.xlu0 %4, %v152
    %v154 = vpop.permute.xlu0 %153
    %155 = vst [vmem:[%s150] sm:$0xff] %v154
    %s156 = scalar_lea.vmem [#allocation1], 80
    %s157 = scalar_lea.vmem [#allocation0], 80
    %v158 = vld [vmem:[%s157] sm:$0xff]
    %159 = vperm.xlu0 %4, %v158
    %v160 = vpop.permute.xlu0 %159
    %161 = vst [vmem:[%s156] sm:$0xff] %v160
    %s162 = scalar_lea.vmem %s156, 8 [#allocation1]
    %s163 = scalar_lea.vmem %s157, 8 [#allocation0]
    %v164 = vld [vmem:[%s163] sm:$0xff]
    %165 = vperm.xlu0 %4, %v164
    %v166 = vpop.permute.xlu0 %165
    %167 = vst [vmem:[%s162] sm:$0xff] %v166
    %s168 = scalar_lea.vmem [#allocation1], 96
    %s169 = scalar_lea.vmem [#allocation0], 96
    %v170 = vld [vmem:[%s169] sm:$0xff]
    %171 = vperm.xlu0 %4, %v170
    %v172 = vpop.permute.xlu0 %171
    %173 = vst [vmem:[%s168] sm:$0xff] %v172
    %s174 = scalar_lea.vmem %s168, 8 [#allocation1]
    %s175 = scalar_lea.vmem %s169, 8 [#allocation0]
    %v176 = vld [vmem:[%s175] sm:$0xff]
    %177 = vperm.xlu0 %4, %v176
    %v178 = vpop.permute.xlu0 %177
    %179 = vst [vmem:[%s174] sm:$0xff] %v178
    %s180 = scalar_lea.vmem [#allocation1], 112
    %s181 = scalar_lea.vmem [#allocation0], 112
    %v182 = vld [vmem:[%s181] sm:$0xff]
    %183 = vperm.xlu0 %4, %v182
    %v184 = vpop.permute.xlu0 %183
    %185 = vst [vmem:[%s180] sm:$0xff] %v184
    %s186 = scalar_lea.vmem %s180, 8 [#allocation1]
    %s187 = scalar_lea.vmem %s181, 8 [#allocation0]
    %v188 = vld [vmem:[%s187] sm:$0xff]
    %189 = vperm.xlu0 %4, %v188
    %v190 = vpop.permute.xlu0 %189
    %191 = vst [vmem:[%s186] sm:$0xff] %v190
    // Predicated region
    $region36: #{reverse.6} parent=1 // pred_check
      _
    $region37: #{reverse.6} parent=1 // pred_check_branch
      %193 = sbr.rel (0) target = $region39
    $region38: #{reverse.6} parent=1 // pred_region
      // Predicated region
      $region40: #{reverse.6} parent=38 // pred_check
        _
      $region41: #{reverse.6} parent=38 // pred_check_branch
        %195 = sbr.rel (0) target = $region43
      $region42: #{reverse.6} parent=38 // pred_region
        // Predicated region
        $region55: #{reverse.6} parent=42 // pred_check
          _
        $region56: #{reverse.6} parent=42 // pred_check_branch
          %241 = sbr.rel (0) target = $region58
        $region57: #{reverse.6} parent=42 // pred_region
          loop: start=0, step=1, limit=1
          $region59: #{reverse.6} parent=57 // loop_pre_header
            _
          $region60: #{reverse.6} parent=57 // loop_header
            %s243 = sphi 0, %s247
            %p244 = scmp.ge.s32.totalorder %s243, 1
            %s248 = sphi [#allocation1], [#allocation1]
            %s249 = sphi %s1, %s1
          $region61: #{reverse.6} parent=57 // loop_header_branch
            %246 = sbr.rel (%p244) target = $region65
          $region62: #{reverse.6} parent=57 // loop_body
            %v250 = vld [vmem:[%s248] sm:$0xff]
            %251 = vst [vmem:[%s249] sm:$0xff] %v250
            %v252 = vld [vmem:[%s248 + $0x8] sm:$0xff]
            %253 = vst [vmem:[%s249 + $0x8] sm:$0xff] %v252
            %v254 = vld [vmem:[%s248 + $0x10] sm:$0xff]
            %255 = vst [vmem:[%s249 + $0x10] sm:$0xff] %v254
            %v256 = vld [vmem:[%s248 + $0x18] sm:$0xff]
            %257 = vst [vmem:[%s249 + $0x18] sm:$0xff] %v256
            %v258 = vld [vmem:[%s248 + $0x20] sm:$0xff]
            %259 = vst [vmem:[%s249 + $0x20] sm:$0xff] %v258
            %v260 = vld [vmem:[%s248 + $0x28] sm:$0xff]
            %261 = vst [vmem:[%s249 + $0x28] sm:$0xff] %v260
            %v262 = vld [vmem:[%s248 + $0x30] sm:$0xff]
            %263 = vst [vmem:[%s249 + $0x30] sm:$0xff] %v262
            %v264 = vld [vmem:[%s248 + $0x38] sm:$0xff]
            %265 = vst [vmem:[%s249 + $0x38] sm:$0xff] %v264
            %v266 = vld [vmem:[%s248 + $0x40] sm:$0xff]
            %267 = vst [vmem:[%s249 + $0x40] sm:$0xff] %v266
            %v268 = vld [vmem:[%s248 + $0x48] sm:$0xff]
            %269 = vst [vmem:[%s249 + $0x48] sm:$0xff] %v268
            %v270 = vld [vmem:[%s248 + $0x50] sm:$0xff]
            %271 = vst [vmem:[%s249 + $0x50] sm:$0xff] %v270
            %v272 = vld [vmem:[%s248 + $0x58] sm:$0xff]
            %273 = vst [vmem:[%s249 + $0x58] sm:$0xff] %v272
            %v274 = vld [vmem:[%s248 + $0x60] sm:$0xff]
            %275 = vst [vmem:[%s249 + $0x60] sm:$0xff] %v274
            %v276 = vld [vmem:[%s248 + $0x68] sm:$0xff]
            %277 = vst [vmem:[%s249 + $0x68] sm:$0xff] %v276
            %v278 = vld [vmem:[%s248 + $0x70] sm:$0xff]
            %279 = vst [vmem:[%s249 + $0x70] sm:$0xff] %v278
            %v280 = vld [vmem:[%s248 + $0x78] sm:$0xff]
            %281 = vst [vmem:[%s249 + $0x78] sm:$0xff] %v280
          $region63: #{reverse.6} parent=57 // loop_footer
            %s247 = sadd.s32 1, %s243
          $region64: #{reverse.6} parent=57 // loop_footer_branch
            %242 = sbr.rel target = $region60
          $region65: #{reverse.6} parent=57 // loop_exit
            _
        $region58: #{reverse.6} parent=42 // pred_fallthru
          _
        // Predicated region
        $region66: #{reverse.6} parent=42 // pred_check
          _
        $region67: #{reverse.6} parent=42 // pred_check_branch
          %283 = sbr.rel target = $region69
        $region68: #{reverse.6} parent=42 // pred_region
          _
        $region69: #{reverse.6} parent=42 // pred_fallthru
          _
      $region43: #{reverse.6} parent=38 // pred_fallthru
        _
      // Predicated region
      $region44: #{reverse.6} parent=38 // pred_check
        _
      $region45: #{reverse.6} parent=38 // pred_check_branch
        %197 = sbr.rel target = $region47
      $region46: #{reverse.6} parent=38 // pred_region
        %s199 = ssub.s32 256, 1
        loop: start=0, step=1, limit=1
        $region48: #{reverse.6} parent=46 // loop_pre_header
          _
        $region49: #{reverse.6} parent=46 // loop_header
          %s201 = sphi 0, %s205
          %p202 = scmp.ge.s32.totalorder %s201, 1
          %s206 = sphi [#allocation1], [#allocation1]
          %s207 = sphi %s1, %s1
        $region50: #{reverse.6} parent=46 // loop_header_branch
          %204 = sbr.rel (%p202) target = $region54
        $region51: #{reverse.6} parent=46 // loop_body
          %v208 = vld [vmem:[%s206] sm:%s199]
          %209 = vst [vmem:[%s207] sm:%s199] %v208
          %v210 = vld [vmem:[%s206 + $0x8] sm:%s199]
          %211 = vst [vmem:[%s207 + $0x8] sm:%s199] %v210
          %v212 = vld [vmem:[%s206 + $0x10] sm:%s199]
          %213 = vst [vmem:[%s207 + $0x10] sm:%s199] %v212
          %v214 = vld [vmem:[%s206 + $0x18] sm:%s199]
          %215 = vst [vmem:[%s207 + $0x18] sm:%s199] %v214
          %v216 = vld [vmem:[%s206 + $0x20] sm:%s199]
          %217 = vst [vmem:[%s207 + $0x20] sm:%s199] %v216
          %v218 = vld [vmem:[%s206 + $0x28] sm:%s199]
          %219 = vst [vmem:[%s207 + $0x28] sm:%s199] %v218
          %v220 = vld [vmem:[%s206 + $0x30] sm:%s199]
          %221 = vst [vmem:[%s207 + $0x30] sm:%s199] %v220
          %v222 = vld [vmem:[%s206 + $0x38] sm:%s199]
          %223 = vst [vmem:[%s207 + $0x38] sm:%s199] %v222
          %v224 = vld [vmem:[%s206 + $0x40] sm:%s199]
          %225 = vst [vmem:[%s207 + $0x40] sm:%s199] %v224
          %v226 = vld [vmem:[%s206 + $0x48] sm:%s199]
          %227 = vst [vmem:[%s207 + $0x48] sm:%s199] %v226
          %v228 = vld [vmem:[%s206 + $0x50] sm:%s199]
          %229 = vst [vmem:[%s207 + $0x50] sm:%s199] %v228
          %v230 = vld [vmem:[%s206 + $0x58] sm:%s199]
          %231 = vst [vmem:[%s207 + $0x58] sm:%s199] %v230
          %v232 = vld [vmem:[%s206 + $0x60] sm:%s199]
          %233 = vst [vmem:[%s207 + $0x60] sm:%s199] %v232
          %v234 = vld [vmem:[%s206 + $0x68] sm:%s199]
          %235 = vst [vmem:[%s207 + $0x68] sm:%s199] %v234
          %v236 = vld [vmem:[%s206 + $0x70] sm:%s199]
          %237 = vst [vmem:[%s207 + $0x70] sm:%s199] %v236
          %v238 = vld [vmem:[%s206 + $0x78] sm:%s199]
          %239 = vst [vmem:[%s207 + $0x78] sm:%s199] %v238
        $region52: #{reverse.6} parent=46 // loop_footer
          %s205 = sadd.s32 1, %s201
        $region53: #{reverse.6} parent=46 // loop_footer_branch
          %200 = sbr.rel target = $region49
        $region54: #{reverse.6} parent=46 // loop_exit
          _
      $region47: #{reverse.6} parent=38 // pred_fallthru
        _
    $region39: #{reverse.6} parent=1 // pred_fallthru
      _
    %284 = vnop

// kernel: spectral_conv2d.2
$region0: #{spectral_conv2d.2}
  #allocation0 [shape = 'u32[]', space=smem, size = 0x4, offset = 0x4, fixed_abs, tag = 'smem constant byte address 0x4 - core index']
  #allocation1 [shape = 'u32[144,128]{1,0:T(1,128)}', space=vmem, size = 0x12000, scoped, tag = 'internal scratch']
  %s0 = inlined_call_operand.vmem [shape: f32[32,32], index: 0, kind: input, shape index: {}]
  %s1 = inlined_call_operand.vmem [shape: f32[32,32], index: 1, kind: input, shape index: {}]
  %s2 = inlined_call_operand.vmem [shape: f32[32,128], index: 2, kind: input, shape index: {}]
  %s3 = inlined_call_operand.vmem [shape: f32[32,128], index: 3, kind: input, shape index: {}]
  %s4 = inlined_call_operand.vmem [shape: f32[32,32], index: 4, kind: input, shape index: {}]
  %s5 = inlined_call_operand.vmem [shape: f32[32,32], index: 5, kind: input, shape index: {}]
  %s6 = inlined_call_operand.vmem [shape: f32[32,128], index: 6, kind: input, shape index: {}]
  %s7 = inlined_call_operand.vmem [shape: f32[32,128], index: 7, kind: input, shape index: {}]
  %s8 = inlined_call_operand.vmem [shape: f32[32,128], index: 8, kind: output, shape index: {0}]
  %s9 = inlined_call_operand.vmem [shape: f32[32,128], index: 9, kind: output, shape index: {1}]
  %10 = xla_tuple %s8, %s9
  %s11 = sld [smem:[#allocation0]]
  $region50: #{spectral_conv2d.2} parent=0
    _
  %s13 = ssub.s32 1, %s11
  %s14 = scalar_select 0, %s13, %s11
  // Predicated region
  $region2: #{spectral_conv2d.2} parent=0 // pred_check
    _
  $region3: #{spectral_conv2d.2} parent=0 // pred_check_branch
    %16 = sbr.rel (0) target = $region5
  $region4: #{spectral_conv2d.2} parent=0 // pred_region
    _
  $region5: #{spectral_conv2d.2} parent=0 // pred_fallthru
    _
  // Predicated region
  $region6: #{spectral_conv2d.2} parent=0 // pred_check
    _
  $region7: #{spectral_conv2d.2} parent=0 // pred_check_branch
    %18 = sbr.rel (0) target = $region9
  $region8: #{spectral_conv2d.2} parent=0 // pred_region
    _
  $region9: #{spectral_conv2d.2} parent=0 // pred_fallthru
    _
  // Predicated region
  $region10: #{spectral_conv2d.2} parent=0 // pred_check
    _
  $region11: #{spectral_conv2d.2} parent=0 // pred_check_branch
    %20 = sbr.rel (0) target = $region13
  $region12: #{spectral_conv2d.2} parent=0 // pred_region
    _
  $region13: #{spectral_conv2d.2} parent=0 // pred_fallthru
    _
  // Predicated region
  $region14: #{spectral_conv2d.2} parent=0 // pred_check
    _
  $region15: #{spectral_conv2d.2} parent=0 // pred_check_branch
    %22 = sbr.rel (0) target = $region17
  $region16: #{spectral_conv2d.2} parent=0 // pred_region
    _
  $region17: #{spectral_conv2d.2} parent=0 // pred_fallthru
    _
  // Predicated region
  $region18: #{spectral_conv2d.2} parent=0 // pred_check
    _
  $region19: #{spectral_conv2d.2} parent=0 // pred_check_branch
    %24 = sbr.rel (0) target = $region21
  $region20: #{spectral_conv2d.2} parent=0 // pred_region
    _
  $region21: #{spectral_conv2d.2} parent=0 // pred_fallthru
    _
  // Predicated region
  $region22: #{spectral_conv2d.2} parent=0 // pred_check
    _
  $region23: #{spectral_conv2d.2} parent=0 // pred_check_branch
    %26 = sbr.rel (0) target = $region25
  $region24: #{spectral_conv2d.2} parent=0 // pred_region
    _
  $region25: #{spectral_conv2d.2} parent=0 // pred_fallthru
    _
  // Predicated region
  $region26: #{spectral_conv2d.2} parent=0 // pred_check
    _
  $region27: #{spectral_conv2d.2} parent=0 // pred_check_branch
    %28 = sbr.rel (0) target = $region29
  $region28: #{spectral_conv2d.2} parent=0 // pred_region
    _
  $region29: #{spectral_conv2d.2} parent=0 // pred_fallthru
    _
  // Predicated region
  $region30: #{spectral_conv2d.2} parent=0 // pred_check
    _
  $region31: #{spectral_conv2d.2} parent=0 // pred_check_branch
    %30 = sbr.rel (0) target = $region33
  $region32: #{spectral_conv2d.2} parent=0 // pred_region
    _
  $region33: #{spectral_conv2d.2} parent=0 // pred_fallthru
    _
  %v31 = vld [vmem:[%s0] sm:$0xff]
  %v32 = vld [vmem:[%s0 + $0x8] sm:$0xff]
  %v33 = vld [vmem:[%s0 + $0x10] sm:$0xff]
  %v34 = vld [vmem:[%s0 + $0x18] sm:$0xff]
  %v35 = vld [vmem:[%s2] sm:$0xff]
  %v36 = vld [vmem:[%s2 + $0x8] sm:$0xff]
  %v37 = vld [vmem:[%s2 + $0x10] sm:$0xff]
  %v38 = vld [vmem:[%s2 + $0x18] sm:$0xff]
  %v39 = vld [vmem:[%s1] sm:$0xff]
  %v40 = vld [vmem:[%s1 + $0x8] sm:$0xff]
  %v41 = vld [vmem:[%s1 + $0x10] sm:$0xff]
  %v42 = vld [vmem:[%s1 + $0x18] sm:$0xff]
  %v43 = vld [vmem:[%s3] sm:$0xff]
  %v44 = vld [vmem:[%s3 + $0x8] sm:$0xff]
  %v45 = vld [vmem:[%s3 + $0x10] sm:$0xff]
  %v46 = vld [vmem:[%s3 + $0x18] sm:$0xff]
  %vm47 = vcmask 261120
  %v49 = vsel %vm47, %v39, 0
  %v52 = vsel %vm47, %v40, 0
  %v55 = vsel %vm47, %v41, 0
  %v58 = vsel %vm47, %v42, 0
  %60 = vmatprep.subr.mxu0 0.0
  %61 = vmatpush1.msra.mxu0 0.0
  %62 = vmatprep.subr.mxu0 0.0
  %63 = vmatpush1.msra.mxu0 0.0
  %64 = vmatprep.subr.mxu0 0.0
  %65 = vmatpush1.msra.mxu0 0.0
  %66 = vmatprep.subr.mxu0 0.0
  %67 = vmatpush1.msra.mxu0 0.0
  %68 = vmatprep.subr.mxu0 0.0
  %69 = vmatpush1.msra.mxu0 0.0
  %70 = vmatprep.subr.mxu0 0.0
  %71 = vmatpush1.msra.mxu0 0.0
  %72 = vmatprep.subr.mxu0 0.0
  %73 = vmatpush1.msra.mxu0 0.0
  %74 = vmatprep.subr.mxu0 0.0
  %75 = vmatpush1.msra.mxu0 0.0
  %76 = vmatprep.subr.mxu0 0.0
  %77 = vmatpush1.msra.mxu0 0.0
  %78 = vmatprep.subr.mxu0 0.0
  %79 = vmatpush1.msra.mxu0 0.0
  %80 = vmatprep.subr.mxu0 0.0
  %81 = vmatpush1.msra.mxu0 0.0
  %82 = vmatprep.subr.mxu0 0.0
  %83 = vmatpush1.msra.mxu0 0.0
  %84 = vmatprep.subr.mxu0 0.0
  %85 = vmatpush1.msra.mxu0 %v46
  %86 = vmatprep.subr.mxu0 0.0
  %87 = vmatpush1.msra.mxu0 %v45
  %88 = vmatprep.subr.mxu0 0.0
  %89 = vmatpush1.msra.mxu0 %v44
  %90 = vmatprep.subr.mxu0 0.0
  %91 = vmatpush1.msra.mxu0 %v43
  %92 = vmatprep.subr.mxu0 0.0
  %93 = vmatpush2.msra.mxu0 0.0
  %94 = vmatprep.subr.mxu0 0.0
  %95 = vmatpush2.msra.mxu0 0.0
  %96 = vmatprep.subr.mxu0 0.0
  %97 = vmatpush2.msra.mxu0 0.0
  %98 = vmatprep.subr.mxu0 0.0
  %99 = vmatpush2.msra.mxu0 0.0
  %100 = vmatprep.subr.mxu0 0.0
  %101 = vmatpush2.msra.mxu0 0.0
  %102 = vmatprep.subr.mxu0 0.0
  %103 = vmatpush2.msra.mxu0 0.0
  %104 = vmatprep.subr.mxu0 0.0
  %105 = vmatpush2.msra.mxu0 0.0
  %106 = vmatprep.subr.mxu0 0.0
  %107 = vmatpush2.msra.mxu0 0.0
  %108 = vmatprep.subr.mxu0 0.0
  %109 = vmatpush2.msra.mxu0 0.0
  %110 = vmatprep.subr.mxu0 0.0
  %111 = vmatpush2.msra.mxu0 0.0
  %112 = vmatprep.subr.mxu0 0.0
  %113 = vmatpush2.msra.mxu0 0.0
  %114 = vmatprep.subr.mxu0 0.0
  %115 = vmatpush2.msra.mxu0 0.0
  %116 = vmatprep.subr.mxu0 0.0
  %117 = vmatpush2.msra.mxu0 0.0
  %118 = vmatprep.subr.mxu0 0.0
  %119 = vmatpush2.msra.mxu0 0.0
  %120 = vmatprep.subr.mxu0 0.0
  %121 = vmatpush2.msra.mxu0 0.0
  %122 = vmatprep.subr.mxu0 0.0
  %123 = vmatpush2.msra.mxu0 0.0
  %124 = vmatprep.mubr.f32.mxu0 0.0
  %125 = vmatmul.mubr.f32.gmra.mxu0 %v49
  %v126 = vpop.f32.mrf.mxu0
  %v127 = vadd.f32 0.0, %v126
  %v128 = vpop.f32.mrf.mxu0
  %129 = vmatprep.mubr.f32.mxu0 0.0
  %130 = vmatmul.mubr.f32.gmra.mxu0 %v52
  %v131 = vpop.f32.mrf.mxu0
  %v132 = vadd.f32 0.0, %v131
  %v133 = vpop.f32.mrf.mxu0
  %134 = vmatprep.mubr.f32.mxu0 0.0
  %135 = vmatmul.mubr.f32.gmra.mxu0 %v55
  %v136 = vpop.f32.mrf.mxu0
  %v137 = vadd.f32 0.0, %v136
  %v138 = vpop.f32.mrf.mxu0
  %139 = vmatprep.mubr.f32.mxu0 0.0
  %140 = vmatmul.mubr.f32.gmra.mxu0 %v58
  %v141 = vpop.f32.mrf.mxu0
  %v142 = vadd.f32 0.0, %v141
  %v143 = vpop.f32.mrf.mxu0
  %144 = vdwg.mxu0
  %v146 = vsel %vm47, %v31, 0
  %v149 = vsel %vm47, %v32, 0
  %v152 = vsel %vm47, %v33, 0
  %v155 = vsel %vm47, %v34, 0
  %157 = vmatprep.subr.mxu0 0.0
  %158 = vmatpush1.msra.mxu0 0.0
  %159 = vmatprep.subr.mxu0 0.0
  %160 = vmatpush1.msra.mxu0 0.0
  %161 = vmatprep.subr.mxu0 0.0
  %162 = vmatpush1.msra.mxu0 0.0
  %163 = vmatprep.subr.mxu0 0.0
  %164 = vmatpush1.msra.mxu0 0.0
  %165 = vmatprep.subr.mxu0 0.0
  %166 = vmatpush1.msra.mxu0 0.0
  %167 = vmatprep.subr.mxu0 0.0
  %168 = vmatpush1.msra.mxu0 0.0
  %169 = vmatprep.subr.mxu0 0.0
  %170 = vmatpush1.msra.mxu0 0.0
  %171 = vmatprep.subr.mxu0 0.0
  %172 = vmatpush1.msra.mxu0 0.0
  %173 = vmatprep.subr.mxu0 0.0
  %174 = vmatpush1.msra.mxu0 0.0
  %175 = vmatprep.subr.mxu0 0.0
  %176 = vmatpush1.msra.mxu0 0.0
  %177 = vmatprep.subr.mxu0 0.0
  %178 = vmatpush1.msra.mxu0 0.0
  %179 = vmatprep.subr.mxu0 0.0
  %180 = vmatpush1.msra.mxu0 0.0
  %181 = vmatprep.subr.mxu0 0.0
  %182 = vmatpush1.msra.mxu0 %v38
  %183 = vmatprep.subr.mxu0 0.0
  %184 = vmatpush1.msra.mxu0 %v37
  %185 = vmatprep.subr.mxu0 0.0
  %186 = vmatpush1.msra.mxu0 %v36
  %187 = vmatprep.subr.mxu0 0.0
  %188 = vmatpush1.msra.mxu0 %v35
  %189 = vmatprep.subr.mxu0 0.0
  %190 = vmatpush2.msra.mxu0 0.0
  %191 = vmatprep.subr.mxu0 0.0
  %192 = vmatpush2.msra.mxu0 0.0
  %193 = vmatprep.subr.mxu0 0.0
  %194 = vmatpush2.msra.mxu0 0.0
  %195 = vmatprep.subr.mxu0 0.0
  %196 = vmatpush2.msra.mxu0 0.0
  %197 = vmatprep.subr.mxu0 0.0
  %198 = vmatpush2.msra.mxu0 0.0
  %199 = vmatprep.subr.mxu0 0.0
  %200 = vmatpush2.msra.mxu0 0.0
  %201 = vmatprep.subr.mxu0 0.0
  %202 = vmatpush2.msra.mxu0 0.0
  %203 = vmatprep.subr.mxu0 0.0
  %204 = vmatpush2.msra.mxu0 0.0
  %205 = vmatprep.subr.mxu0 0.0
  %206 = vmatpush2.msra.mxu0 0.0
  %207 = vmatprep.subr.mxu0 0.0
  %208 = vmatpush2.msra.mxu0 0.0
  %209 = vmatprep.subr.mxu0 0.0
  %210 = vmatpush2.msra.mxu0 0.0
  %211 = vmatprep.subr.mxu0 0.0
  %212 = vmatpush2.msra.mxu0 0.0
  %213 = vmatprep.subr.mxu0 0.0
  %214 = vmatpush2.msra.mxu0 0.0
  %215 = vmatprep.subr.mxu0 0.0
  %216 = vmatpush2.msra.mxu0 0.0
  %217 = vmatprep.subr.mxu0 0.0
  %218 = vmatpush2.msra.mxu0 0.0
  %219 = vmatprep.subr.mxu0 0.0
  %220 = vmatpush2.msra.mxu0 0.0
  %221 = vmatprep.mubr.f32.mxu0 0.0
  %222 = vmatmul.mubr.f32.gmra.mxu0 %v146
  %v223 = vpop.f32.mrf.mxu0
  %v224 = vadd.f32 %v127, %v223
  %v225 = vpop.f32.mrf.mxu0
  %226 = vmatprep.mubr.f32.mxu0 0.0
  %227 = vmatmul.mubr.f32.gmra.mxu0 %v149
  %v228 = vpop.f32.mrf.mxu0
  %v229 = vadd.f32 %v132, %v228
  %v230 = vpop.f32.mrf.mxu0
  %231 = vmatprep.mubr.f32.mxu0 0.0
  %232 = vmatmul.mubr.f32.gmra.mxu0 %v152
  %v233 = vpop.f32.mrf.mxu0
  %v234 = vadd.f32 %v137, %v233
  %v235 = vpop.f32.mrf.mxu0
  %236 = vmatprep.mubr.f32.mxu0 0.0
  %237 = vmatmul.mubr.f32.gmra.mxu0 %v155
  %v238 = vpop.f32.mrf.mxu0
  %v239 = vadd.f32 %v142, %v238
  %v240 = vpop.f32.mrf.mxu0
  %241 = vdwg.mxu0
  %242 = vst [vmem:[%s8] sm:$0xff] %v224
  %243 = vst [vmem:[%s8 + $0x8] sm:$0xff] %v229
  %244 = vst [vmem:[%s8 + $0x10] sm:$0xff] %v234
  %245 = vst [vmem:[%s8 + $0x18] sm:$0xff] %v239
  %v246 = vld [vmem:[%s4] sm:$0xff]
  %v247 = vld [vmem:[%s4 + $0x8] sm:$0xff]
  %v248 = vld [vmem:[%s4 + $0x10] sm:$0xff]
  %v249 = vld [vmem:[%s4 + $0x18] sm:$0xff]
  %v250 = vld [vmem:[%s6] sm:$0xff]
  %v251 = vld [vmem:[%s6 + $0x8] sm:$0xff]
  %v252 = vld [vmem:[%s6 + $0x10] sm:$0xff]
  %v253 = vld [vmem:[%s6 + $0x18] sm:$0xff]
  %v254 = vld [vmem:[%s5] sm:$0xff]
  %v255 = vld [vmem:[%s5 + $0x8] sm:$0xff]
  %v256 = vld [vmem:[%s5 + $0x10] sm:$0xff]
  %v257 = vld [vmem:[%s5 + $0x18] sm:$0xff]
  %v258 = vld [vmem:[%s7] sm:$0xff]
  %v259 = vld [vmem:[%s7 + $0x8] sm:$0xff]
  %v260 = vld [vmem:[%s7 + $0x10] sm:$0xff]
  %v261 = vld [vmem:[%s7 + $0x18] sm:$0xff]
  %v263 = vsel %vm47, %v254, 0
  %v266 = vsel %vm47, %v255, 0
  %v269 = vsel %vm47, %v256, 0
  %v272 = vsel %vm47, %v257, 0
  %274 = vmatprep.subr.mxu0 0.0
  %275 = vmatpush1.msra.mxu0 0.0
  %276 = vmatprep.subr.mxu0 0.0
  %277 = vmatpush1.msra.mxu0 0.0
  %278 = vmatprep.subr.mxu0 0.0
  %279 = vmatpush1.msra.mxu0 0.0
  %280 = vmatprep.subr.mxu0 0.0
  %281 = vmatpush1.msra.mxu0 0.0
  %282 = vmatprep.subr.mxu0 0.0
  %283 = vmatpush1.msra.mxu0 0.0
  %284 = vmatprep.subr.mxu0 0.0
  %285 = vmatpush1.msra.mxu0 0.0
  %286 = vmatprep.subr.mxu0 0.0
  %287 = vmatpush1.msra.mxu0 0.0
  %288 = vmatprep.subr.mxu0 0.0
  %289 = vmatpush1.msra.mxu0 0.0
  %290 = vmatprep.subr.mxu0 0.0
  %291 = vmatpush1.msra.mxu0 0.0
  %292 = vmatprep.subr.mxu0 0.0
  %293 = vmatpush1.msra.mxu0 0.0
  %294 = vmatprep.subr.mxu0 0.0
  %295 = vmatpush1.msra.mxu0 0.0
  %296 = vmatprep.subr.mxu0 0.0
  %297 = vmatpush1.msra.mxu0 0.0
  %298 = vmatprep.subr.mxu0 0.0
  %299 = vmatpush1.msra.mxu0 %v261
  %300 = vmatprep.subr.mxu0 0.0
  %301 = vmatpush1.msra.mxu0 %v260
  %302 = vmatprep.subr.mxu0 0.0
  %303 = vmatpush1.msra.mxu0 %v259
  %304 = vmatprep.subr.mxu0 0.0
  %305 = vmatpush1.msra.mxu0 %v258
  %306 = vmatprep.subr.mxu0 0.0
  %307 = vmatpush2.msra.mxu0 0.0
  %308 = vmatprep.subr.mxu0 0.0
  %309 = vmatpush2.msra.mxu0 0.0
  %310 = vmatprep.subr.mxu0 0.0
  %311 = vmatpush2.msra.mxu0 0.0
  %312 = vmatprep.subr.mxu0 0.0
  %313 = vmatpush2.msra.mxu0 0.0
  %314 = vmatprep.subr.mxu0 0.0
  %315 = vmatpush2.msra.mxu0 0.0
  %316 = vmatprep.subr.mxu0 0.0
  %317 = vmatpush2.msra.mxu0 0.0
  %318 = vmatprep.subr.mxu0 0.0
  %319 = vmatpush2.msra.mxu0 0.0
  %320 = vmatprep.subr.mxu0 0.0
  %321 = vmatpush2.msra.mxu0 0.0
  %322 = vmatprep.subr.mxu0 0.0
  %323 = vmatpush2.msra.mxu0 0.0
  %324 = vmatprep.subr.mxu0 0.0
  %325 = vmatpush2.msra.mxu0 0.0
  %326 = vmatprep.subr.mxu0 0.0
  %327 = vmatpush2.msra.mxu0 0.0
  %328 = vmatprep.subr.mxu0 0.0
  %329 = vmatpush2.msra.mxu0 0.0
  %330 = vmatprep.subr.mxu0 0.0
  %331 = vmatpush2.msra.mxu0 0.0
  %332 = vmatprep.subr.mxu0 0.0
  %333 = vmatpush2.msra.mxu0 0.0
  %334 = vmatprep.subr.mxu0 0.0
  %335 = vmatpush2.msra.mxu0 0.0
  %336 = vmatprep.subr.mxu0 0.0
  %337 = vmatpush2.msra.mxu0 0.0
  %338 = vmatprep.mubr.f32.mxu0 0.0
  %339 = vmatmul.mubr.f32.gmra.mxu0 %v263
  %v340 = vpop.f32.mrf.mxu0
  %v341 = vadd.f32 0.0, %v340
  %v342 = vpop.f32.mrf.mxu0
  %343 = vmatprep.mubr.f32.mxu0 0.0
  %344 = vmatmul.mubr.f32.gmra.mxu0 %v266
  %v345 = vpop.f32.mrf.mxu0
  %v346 = vadd.f32 0.0, %v345
  %v347 = vpop.f32.mrf.mxu0
  %348 = vmatprep.mubr.f32.mxu0 0.0
  %349 = vmatmul.mubr.f32.gmra.mxu0 %v269
  %v350 = vpop.f32.mrf.mxu0
  %v351 = vadd.f32 0.0, %v350
  %v352 = vpop.f32.mrf.mxu0
  %353 = vmatprep.mubr.f32.mxu0 0.0
  %354 = vmatmul.mubr.f32.gmra.mxu0 %v272
  %v355 = vpop.f32.mrf.mxu0
  %v356 = vadd.f32 0.0, %v355
  %v357 = vpop.f32.mrf.mxu0
  %358 = vdwg.mxu0
  %v360 = vsel %vm47, %v246, 0
  %v363 = vsel %vm47, %v247, 0
  %v366 = vsel %vm47, %v248, 0
  %v369 = vsel %vm47, %v249, 0
  %371 = vmatprep.subr.mxu0 0.0
  %372 = vmatpush1.msra.mxu0 0.0
  %373 = vmatprep.subr.mxu0 0.0
  %374 = vmatpush1.msra.mxu0 0.0
  %375 = vmatprep.subr.mxu0 0.0
  %376 = vmatpush1.msra.mxu0 0.0
  %377 = vmatprep.subr.mxu0 0.0
  %378 = vmatpush1.msra.mxu0 0.0
  %379 = vmatprep.subr.mxu0 0.0
  %380 = vmatpush1.msra.mxu0 0.0
  %381 = vmatprep.subr.mxu0 0.0
  %382 = vmatpush1.msra.mxu0 0.0
  %383 = vmatprep.subr.mxu0 0.0
  %384 = vmatpush1.msra.mxu0 0.0
  %385 = vmatprep.subr.mxu0 0.0
  %386 = vmatpush1.msra.mxu0 0.0
  %387 = vmatprep.subr.mxu0 0.0
  %388 = vmatpush1.msra.mxu0 0.0
  %389 = vmatprep.subr.mxu0 0.0
  %390 = vmatpush1.msra.mxu0 0.0
  %391 = vmatprep.subr.mxu0 0.0
  %392 = vmatpush1.msra.mxu0 0.0
  %393 = vmatprep.subr.mxu0 0.0
  %394 = vmatpush1.msra.mxu0 0.0
  %395 = vmatprep.subr.mxu0 0.0
  %396 = vmatpush1.msra.mxu0 %v253
  %397 = vmatprep.subr.mxu0 0.0
  %398 = vmatpush1.msra.mxu0 %v252
  %399 = vmatprep.subr.mxu0 0.0
  %400 = vmatpush1.msra.mxu0 %v251
  %401 = vmatprep.subr.mxu0 0.0
  %402 = vmatpush1.msra.mxu0 %v250
  %403 = vmatprep.subr.mxu0 0.0
  %404 = vmatpush2.msra.mxu0 0.0
  %405 = vmatprep.subr.mxu0 0.0
  %406 = vmatpush2.msra.mxu0 0.0
  %407 = vmatprep.subr.mxu0 0.0
  %408 = vmatpush2.msra.mxu0 0.0
  %409 = vmatprep.subr.mxu0 0.0
  %410 = vmatpush2.msra.mxu0 0.0
  %411 = vmatprep.subr.mxu0 0.0
  %412 = vmatpush2.msra.mxu0 0.0
  %413 = vmatprep.subr.mxu0 0.0
  %414 = vmatpush2.msra.mxu0 0.0
  %415 = vmatprep.subr.mxu0 0.0
  %416 = vmatpush2.msra.mxu0 0.0
  %417 = vmatprep.subr.mxu0 0.0
  %418 = vmatpush2.msra.mxu0 0.0
  %419 = vmatprep.subr.mxu0 0.0
  %420 = vmatpush2.msra.mxu0 0.0
  %421 = vmatprep.subr.mxu0 0.0
  %422 = vmatpush2.msra.mxu0 0.0
  %423 = vmatprep.subr.mxu0 0.0
  %424 = vmatpush2.msra.mxu0 0.0
  %425 = vmatprep.subr.mxu0 0.0
  %426 = vmatpush2.msra.mxu0 0.0
  %427 = vmatprep.subr.mxu0 0.0
  %428 = vmatpush2.msra.mxu0 0.0
  %429 = vmatprep.subr.mxu0 0.0
  %430 = vmatpush2.msra.mxu0 0.0
  %431 = vmatprep.subr.mxu0 0.0
  %432 = vmatpush2.msra.mxu0 0.0
  %433 = vmatprep.subr.mxu0 0.0
  %434 = vmatpush2.msra.mxu0 0.0
  %435 = vmatprep.mubr.f32.mxu0 0.0
  %436 = vmatmul.mubr.f32.gmra.mxu0 %v360
  %v437 = vpop.f32.mrf.mxu0
  %v438 = vadd.f32 %v341, %v437
  %v439 = vpop.f32.mrf.mxu0
  %440 = vmatprep.mubr.f32.mxu0 0.0
  %441 = vmatmul.mubr.f32.gmra.mxu0 %v363
  %v442 = vpop.f32.mrf.mxu0
  %v443 = vadd.f32 %v346, %v442
  %v444 = vpop.f32.mrf.mxu0
  %445 = vmatprep.mubr.f32.mxu0 0.0
  %446 = vmatmul.mubr.f32.gmra.mxu0 %v366
  %v447 = vpop.f32.mrf.mxu0
  %v448 = vadd.f32 %v351, %v447
  %v449 = vpop.f32.mrf.mxu0
  %450 = vmatprep.mubr.f32.mxu0 0.0
  %451 = vmatmul.mubr.f32.gmra.mxu0 %v369
  %v452 = vpop.f32.mrf.mxu0
  %v453 = vadd.f32 %v356, %v452
  %v454 = vpop.f32.mrf.mxu0
  %455 = vdwg.mxu0
  %456 = vst [vmem:[%s9] sm:$0xff] %v438
  %457 = vst [vmem:[%s9 + $0x8] sm:$0xff] %v443
  %458 = vst [vmem:[%s9 + $0x10] sm:$0xff] %v448
  %459 = vst [vmem:[%s9 + $0x18] sm:$0xff] %v453
  // Predicated region
  $region34: #{spectral_conv2d.2} parent=0 // pred_check
    _
  $region35: #{spectral_conv2d.2} parent=0 // pred_check_branch
    %461 = sbr.rel (0) target = $region37
  $region36: #{spectral_conv2d.2} parent=0 // pred_region
    _
  $region37: #{spectral_conv2d.2} parent=0 // pred_fallthru
    _
  // Predicated region
  $region38: #{spectral_conv2d.2} parent=0 // pred_check
    _
  $region39: #{spectral_conv2d.2} parent=0 // pred_check_branch
    %463 = sbr.rel (0) target = $region41
  $region40: #{spectral_conv2d.2} parent=0 // pred_region
    _
  $region41: #{spectral_conv2d.2} parent=0 // pred_fallthru
    _
  // Predicated region
  $region42: #{spectral_conv2d.2} parent=0 // pred_check
    _
  $region43: #{spectral_conv2d.2} parent=0 // pred_check_branch
    %465 = sbr.rel (0) target = $region45
  $region44: #{spectral_conv2d.2} parent=0 // pred_region
    _
  $region45: #{spectral_conv2d.2} parent=0 // pred_fallthru
    _
  // Predicated region
  $region46: #{spectral_conv2d.2} parent=0 // pred_check
    _
  $region47: #{spectral_conv2d.2} parent=0 // pred_check_branch
    %467 = sbr.rel (0) target = $region49
  $region48: #{spectral_conv2d.2} parent=0 // pred_region
    _
  $region49: #{spectral_conv2d.2} parent=0 // pred_fallthru
    _

// kernel: spectral_conv2d.3
$region0: #{spectral_conv2d.3}
  #allocation0 [shape = 'u32[]', space=smem, size = 0x4, offset = 0x4, fixed_abs, tag = 'smem constant byte address 0x4 - core index']
  #allocation1 [shape = 'u32[144,128]{1,0:T(1,128)}', space=vmem, size = 0x12000, scoped, tag = 'internal scratch']
  %s0 = inlined_call_operand.vmem [shape: f32[2,4,256], index: 0, kind: input, shape index: {}]
  %s1 = inlined_call_operand.vmem [shape: f32[2,4,256], index: 1, kind: input, shape index: {}]
  %s2 = inlined_call_operand.vmem [shape: f32[8,4], index: 2, kind: input, shape index: {}]
  %s3 = inlined_call_operand.vmem [shape: f32[8,1], index: 3, kind: input, shape index: {}]
  %s4 = inlined_call_operand.vmem [shape: f32[4,8], index: 4, kind: input, shape index: {}]
  %s5 = inlined_call_operand.vmem [shape: f32[4,1], index: 5, kind: input, shape index: {}]
  %s6 = inlined_call_operand.vmem [shape: f32[2,4,256], index: 6, kind: output, shape index: {}]
  %s7 = sld [smem:[#allocation0]]
  $region57: #{spectral_conv2d.3} parent=0
    _
  %s9 = ssub.s32 1, %s7
  %s10 = scalar_select 0, %s9, %s7
  loop: start=0, step=1, limit=4
  $region2: #{spectral_conv2d.3} parent=0 // loop_pre_header
    _
  $region3: #{spectral_conv2d.3} parent=0 // loop_header
    %s12 = sphi 0, %s16
    %p13 = scmp.ge.s32.totalorder %s12, 4
    %s19 = sphi 0, %s31
    %s20 = sphi 0, %s27
    %s21 = sphi 0, %s19
    %s22 = sphi 0, %s20
    %s23 = sphi 0, %s21
    %s24 = sphi 0, %s22
    %s36 = sphi 0, %s38
    %s39 = sphi 0, %s36
    %s40 = sphi 0, %s39
    %s56 = sphi 0, %s40
    %s64 = sphi 0, %s66
    %s67 = sphi 0, %s64
    %s68 = sphi 0, %s67
    %s84 = sphi 0, %s68
    %s88 = sphi 0, %s88
    %s90 = sphi 0, %s88
    %s91 = sphi 0, %s90
    %s105 = sphi 0, %s91
    %s109 = sphi 0, %s109
    %s111 = sphi 0, %s109
    %s112 = sphi 0, %s111
    %s126 = sphi 0, %s112
    %s130 = sphi 0, %s130
    %s132 = sphi 0, %s130
    %s133 = sphi 0, %s132
    %s147 = sphi 0, %s133
    %s151 = sphi 0, %s151
    %s153 = sphi 0, %s151
    %s154 = sphi 0, %s153
    %s168 = sphi 0, %s154
    %s176 = sphi 0, %s178
    %s179 = sphi 0, %s176
    %s180 = sphi 0, %s179
    %s196 = sphi 0, %s180
  $region4: #{spectral_conv2d.3} parent=0 // loop_header_branch
    %15 = sbr.rel (%p13) target = $region8
  $region5: #{spectral_conv2d.3} parent=0 // loop_body
    %s17 = ssub.s32 %s12, 1
    %s18 = ssub.s32 %s12, 2
    %s25 = sadd.s32 1, %s20
    %p26 = scmp.ge.s32.totalorder %s25, 1
    %s27 = scalar_select %p26, 0, %s25
    %s28 = sadd.s32 1, %s19
    %s29 = scalar_select %p26, %s28, %s19
    %p30 = scmp.ge.s32.totalorder %s29, 2
    %s31 = scalar_select %p30, 0, %s29
    %s32 = ssub.s32 %s19, %s31
    %s33 = ssub.s32 %s20, %s27
    %s34 = sor.u32 %s32, %s33
    %p35 = scmp.eq.s32.totalorder %s34, 0
    %s37 = sadd.s32 %s36, 1
    %s38 = scalar_select %p35, %s36, %s37
    %p41 = pneg %p35
    %p42 = scmp.eq.s32.totalorder %s12, 1
    %p43 = por %p41, %p42
    %p44 = scmp.ne.s32.totalorder %s36, %s39
    %p45 = scmp.eq.s32.totalorder %s12, 0
    %p46 = por %p44, %p45
    %p47 = scmp.ne.s32.totalorder %s36, %s39
    %p48 = scmp.eq.s32.totalorder %s17, 1
    %p49 = por %p47, %p48
    %p50 = scmp.ne.s32.totalorder %s39, %s40
    %p51 = scmp.eq.s32.totalorder %s17, 0
    %p52 = por %p50, %p51
    %p53 = scmp.ne.s32.totalorder %s39, %s40
    %p54 = scmp.eq.s32.totalorder %s18, 1
    %p55 = por %p53, %p54
    %p57 = scmp.ne.s32.totalorder %s40, %s56
    %p58 = scmp.eq.s32.totalorder %s18, 0
    %p59 = por %p57, %p58
    %s60 = ssub.s32 %s19, %s31
    %s61 = ssub.s32 %s20, %s27
    %s62 = sor.u32 %s60, %s61
    %p63 = scmp.eq.s32.totalorder %s62, 0
    %s65 = sadd.s32 %s64, 1
    %s66 = scalar_select %p63, %s64, %s65
    %p69 = pneg %p63
    %p70 = scmp.eq.s32.totalorder %s12, 1
    %p71 = por %p69, %p70
    %p72 = scmp.ne.s32.totalorder %s64, %s67
    %p73 = scmp.eq.s32.totalorder %s12, 0
    %p74 = por %p72, %p73
    %p75 = scmp.ne.s32.totalorder %s64, %s67
    %p76 = scmp.eq.s32.totalorder %s17, 1
    %p77 = por %p75, %p76
    %p78 = scmp.ne.s32.totalorder %s67, %s68
    %p79 = scmp.eq.s32.totalorder %s17, 0
    %p80 = por %p78, %p79
    %p81 = scmp.ne.s32.totalorder %s67, %s68
    %p82 = scmp.eq.s32.totalorder %s18, 1
    %p83 = por %p81, %p82
    %p85 = scmp.ne.s32.totalorder %s68, %s84
    %p86 = scmp.eq.s32.totalorder %s18, 0
    %p87 = por %p85, %p86
    %s89 = sadd.s32 %s88, 1
    %p92 = scmp.eq.s32.totalorder %s12, 1
    %p93 = scmp.ne.s32.totalorder %s88, %s90
    %p94 = scmp.eq.s32.totalorder %s12, 0
    %p95 = por %p93, %p94
    %p96 = scmp.ne.s32.totalorder %s88, %s90
    %p97 = scmp.eq.s32.totalorder %s17, 1
    %p98 = por %p96, %p97
    %p99 = scmp.ne.s32.totalorder %s90, %s91
    %p100 = scmp.eq.s32.totalorder %s17, 0
    %p101 = por %p99, %p100
    %p102 = scmp.ne.s32.totalorder %s90, %s91
    %p103 = scmp.eq.s32.totalorder %s18, 1
    %p104 = por %p102, %p103
    %p106 = scmp.ne.s32.totalorder %s91, %s105
    %p107 = scmp.eq.s32.totalorder %s18, 0
    %p108 = por %p106, %p107
    %s110 = sadd.s32 %s109, 1
    %p113 = scmp.eq.s32.totalorder %s12, 1
    %p114 = scmp.ne.s32.totalorder %s109, %s111
    %p115 = scmp.eq.s32.totalorder %s12, 0
    %p116 = por %p114, %p115
    %p117 = scmp.ne.s32.totalorder %s109, %s111
    %p118 = scmp.eq.s32.totalorder %s17, 1
    %p119 = por %p117, %p118
    %p120 = scmp.ne.s32.totalorder %s111, %s112
    %p121 = scmp.eq.s32.totalorder %s17, 0
    %p122 = por %p120, %p121
    %p123 = scmp.ne.s32.totalorder %s111, %s112
    %p124 = scmp.eq.s32.totalorder %s18, 1
    %p125 = por %p123, %p124
    %p127 = scmp.ne.s32.totalorder %s112, %s126
    %p128 = scmp.eq.s32.totalorder %s18, 0
    %p129 = por %p127, %p128
    %s131 = sadd.s32 %s130, 1
    %p134 = scmp.eq.s32.totalorder %s12, 1
    %p135 = scmp.ne.s32.totalorder %s130, %s132
    %p136 = scmp.eq.s32.totalorder %s12, 0
    %p137 = por %p135, %p136
    %p138 = scmp.ne.s32.totalorder %s130, %s132
    %p139 = scmp.eq.s32.totalorder %s17, 1
    %p140 = por %p138, %p139
    %p141 = scmp.ne.s32.totalorder %s132, %s133
    %p142 = scmp.eq.s32.totalorder %s17, 0
    %p143 = por %p141, %p142
    %p144 = scmp.ne.s32.totalorder %s132, %s133
    %p145 = scmp.eq.s32.totalorder %s18, 1
    %p146 = por %p144, %p145
    %p148 = scmp.ne.s32.totalorder %s133, %s147
    %p149 = scmp.eq.s32.totalorder %s18, 0
    %p150 = por %p148, %p149
    %s152 = sadd.s32 %s151, 1
    %p155 = scmp.eq.s32.totalorder %s12, 1
    %p156 = scmp.ne.s32.totalorder %s151, %s153
    %p157 = scmp.eq.s32.totalorder %s12, 0
    %p158 = por %p156, %p157
    %p159 = scmp.ne.s32.totalorder %s151, %s153
    %p160 = scmp.eq.s32.totalorder %s17, 1
    %p161 = por %p159, %p160
    %p162 = scmp.ne.s32.totalorder %s153, %s154
    %p163 = scmp.eq.s32.totalorder %s17, 0
    %p164 = por %p162, %p163
    %p165 = scmp.ne.s32.totalorder %s153, %s154
    %p166 = scmp.eq.s32.totalorder %s18, 1
    %p167 = por %p165, %p166
    %p169 = scmp.ne.s32.totalorder %s154, %s168
    %p170 = scmp.eq.s32.totalorder %s18, 0
    %p171 = por %p169, %p170
    %s172 = ssub.s32 %s19, %s31
    %s173 = ssub.s32 %s20, %s27
    %s174 = sor.u32 %s172, %s173
    %p175 = scmp.eq.s32.totalorder %s174, 0
    %s177 = sadd.s32 %s176, 1
    %s178 = scalar_select %p175, %s176, %s177
    %p181 = pneg %p175
    %p182 = scmp.eq.s32.totalorder %s12, 1
    %p183 = por %p181, %p182
    %p184 = scmp.ne.s32.totalorder %s176, %s179
    %p185 = scmp.eq.s32.totalorder %s12, 0
    %p186 = por %p184, %p185
    %p187 = scmp.ne.s32.totalorder %s176, %s179
    %p188 = scmp.eq.s32.totalorder %s17, 1
    %p189 = por %p187, %p188
    %p190 = scmp.ne.s32.totalorder %s179, %s180
    %p191 = scmp.eq.s32.totalorder %s17, 0
    %p192 = por %p190, %p191
    %p193 = scmp.ne.s32.totalorder %s179, %s180
    %p194 = scmp.eq.s32.totalorder %s18, 1
    %p195 = por %p193, %p194
    %p197 = scmp.ne.s32.totalorder %s180, %s196
    %p198 = scmp.eq.s32.totalorder %s18, 0
    %p199 = por %p197, %p198
    %p200 = scmp.le.s32.totalorder 1, %s12
    %p201 = scmp.lt.s32.totalorder %s12, 3
    %p202 = pnand %p200, %p201
    %p203 = pneg %p202
    // Predicated region
    $region9: #{spectral_conv2d.3} parent=5 // pred_check
      _
    $region10: #{spectral_conv2d.3} parent=5 // pred_check_branch
      %205 = sbr.rel (%p202) target = $region12
    $region11: #{spectral_conv2d.3} parent=5 // pred_region
      %s206 = ssub.s32 %s12, 1
      // Predicated region
      $region13: #{spectral_conv2d.3} parent=11 // pred_check
        %p207 = pneg %p101
      $region14: #{spectral_conv2d.3} parent=11 // pred_check_branch
        %209 = sbr.rel (%p207) target = $region16
      $region15: #{spectral_conv2d.3} parent=11 // pred_region
        _
      $region16: #{spectral_conv2d.3} parent=11 // pred_fallthru
        _
      // Predicated region
      $region17: #{spectral_conv2d.3} parent=11 // pred_check
        %p210 = pneg %p122
      $region18: #{spectral_conv2d.3} parent=11 // pred_check_branch
        %212 = sbr.rel (%p210) target = $region20
      $region19: #{spectral_conv2d.3} parent=11 // pred_region
        _
      $region20: #{spectral_conv2d.3} parent=11 // pred_fallthru
        _
      // Predicated region
      $region21: #{spectral_conv2d.3} parent=11 // pred_check
        %p213 = pneg %p143
      $region22: #{spectral_conv2d.3} parent=11 // pred_check_branch
        %215 = sbr.rel (%p213) target = $region24
      $region23: #{spectral_conv2d.3} parent=11 // pred_region
        _
      $region24: #{spectral_conv2d.3} parent=11 // pred_fallthru
        _
      // Predicated region
      $region25: #{spectral_conv2d.3} parent=11 // pred_check
        %p216 = pneg %p164
      $region26: #{spectral_conv2d.3} parent=11 // pred_check_branch
        %218 = sbr.rel (%p216) target = $region28
      $region27: #{spectral_conv2d.3} parent=11 // pred_region
        _
      $region28: #{spectral_conv2d.3} parent=11 // pred_fallthru
        _
    $region12: #{spectral_conv2d.3} parent=5 // pred_fallthru
      _
    %p219 = scmp.lt.s32.totalorder %s12, 2
    // Predicated region
    $region29: #{spectral_conv2d.3} parent=5 // pred_check
      %p220 = pneg %p219
    $region30: #{spectral_conv2d.3} parent=5 // pred_check_branch
      %222 = sbr.rel (%p220) target = $region32
    $region31: #{spectral_conv2d.3} parent=5 // pred_region
      // Predicated region
      $region33: #{spectral_conv2d.3} parent=31 // pred_check
        %p223 = pneg %p46
      $region34: #{spectral_conv2d.3} parent=31 // pred_check_branch
        %225 = sbr.rel (%p223) target = $region36
      $region35: #{spectral_conv2d.3} parent=31 // pred_region
        %s226 = smul.u32 2, %s20
        %p227 = scmp.lt.s32.totalorder %s19, 1
        %s228 = scalar_select %p227, %s19, 1
        %p229 = scmp.lt.s32.totalorder %s226, 1
        %s230 = scalar_select %p229, %s226, 1
        %s231 = smul.addr %s228, 2
        %s232 = sadd.s32 %s230, %s231
        %s233 = smul.addr %s232, 4
        %s234 = scalar_lea.vmem %s0, %s233
        %s235 = smul.u32 2, %s20
      $region36: #{spectral_conv2d.3} parent=31 // pred_fallthru
        _
      // Predicated region
      $region37: #{spectral_conv2d.3} parent=31 // pred_check
        %p236 = pneg %p74
      $region38: #{spectral_conv2d.3} parent=31 // pred_check_branch
        %238 = sbr.rel (%p236) target = $region40
      $region39: #{spectral_conv2d.3} parent=31 // pred_region
        %s239 = smul.u32 2, %s20
        %p240 = scmp.lt.s32.totalorder %s19, 1
        %s241 = scalar_select %p240, %s19, 1
        %p242 = scmp.lt.s32.totalorder %s239, 1
        %s243 = scalar_select %p242, %s239, 1
        %s244 = smul.addr %s241, 2
        %s245 = sadd.s32 %s243, %s244
        %s246 = smul.addr %s245, 4
        %s247 = scalar_lea.vmem %s1, %s246
        %s248 = smul.u32 2, %s20
      $region40: #{spectral_conv2d.3} parent=31 // pred_fallthru
        _
    $region32: #{spectral_conv2d.3} parent=5 // pred_fallthru
      _
    %p249 = scmp.le.s32.totalorder 1, %s12
    %p250 = scmp.lt.s32.totalorder %s12, 3
    %p251 = pnand %p249, %p250
    %p252 = pneg %p251
    // Predicated region
    $region41: #{spectral_conv2d.3} parent=5 // pred_check
      _
    $region42: #{spectral_conv2d.3} parent=5 // pred_check_branch
      %254 = sbr.rel (%p251) target = $region44
    $region43: #{spectral_conv2d.3} parent=5 // pred_region
      %s255 = ssub.s32 %s12, 1
      %s256 = smul.u32 2, %s22
      %p257 = scmp.lt.s32.totalorder %s21, 1
      %s258 = scalar_select %p257, %s21, 1
      %p259 = scmp.lt.s32.totalorder %s256, 1
      %s260 = scalar_select %p259, %s256, 1
      %s261 = smul.addr %s258, 2
      %s262 = sadd.s32 %s260, %s261
      %s263 = smul.addr %s262, 4
      %s264 = scalar_lea.vmem %s0, %s263
      %p265 = pneg %p52
      %p266 = pneg %p49
      %s267 = smul.u32 2, %s22
      %p268 = scmp.lt.s32.totalorder %s21, 1
      %s269 = scalar_select %p268, %s21, 1
      %p270 = scmp.lt.s32.totalorder %s267, 1
      %s271 = scalar_select %p270, %s267, 1
      %s272 = smul.addr %s269, 2
      %s273 = sadd.s32 %s271, %s272
      %s274 = smul.addr %s273, 4
      %s275 = scalar_lea.vmem %s1, %s274
      %p276 = pneg %p80
      %p277 = pneg %p77
      %p278 = pneg %p101
      %p279 = pneg %p98
      %p280 = pneg %p122
      %p281 = pneg %p119
      %p282 = pneg %p143
      %p283 = pneg %p140
      %p284 = pneg %p164
      %p285 = pneg %p161
      %p286 = pneg %p192
      %p287 = pneg %p189
      %s288 = smul.u32 2, %s22
      %p289 = scmp.lt.s32.totalorder %s21, 1
      %s290 = scalar_select %p289, %s21, 1
      %p291 = scmp.lt.s32.totalorder %s288, 1
      %s292 = scalar_select %p291, %s288, 1
      %s293 = smul.addr %s290, 2
      %s294 = sadd.s32 %s292, %s293
      %s295 = smul.addr %s294, 4
      %s296 = scalar_lea.vmem %s6, %s295
      %s297 = smul.u32 2, %s22
      %p298 = scmp.lt.s32.totalorder %s21, 1
      %s299 = scalar_select %p298, %s21, 1
      %p300 = scmp.lt.s32.totalorder %s297, 1
      %s301 = scalar_select %p300, %s297, 1
      %s302 = smul.addr %s299, 2
      %s303 = sadd.s32 %s301, %s302
      %s304 = smul.addr %s303, 4
      %s305 = scalar_lea.vmem %s0, %s304
      %s306 = smul.u32 2, %s22
      %s307 = smul.u32 2, %s22
      %p308 = scmp.lt.s32.totalorder %s21, 1
      %s309 = scalar_select %p308, %s21, 1
      %p310 = scmp.lt.s32.totalorder %s307, 1
      %s311 = scalar_select %p310, %s307, 1
      %s312 = smul.addr %s309, 2
      %s313 = sadd.s32 %s311, %s312
      %s314 = smul.addr %s313, 4
      %s315 = scalar_lea.vmem %s1, %s314
      %s316 = smul.u32 2, %s22
      %s317 = smul.u32 2, %s22
      %p318 = scmp.lt.s32.totalorder %s21, 1
      %s319 = scalar_select %p318, %s21, 1
      %p320 = scmp.lt.s32.totalorder %s317, 1
      %s321 = scalar_select %p320, %s317, 1
      %s322 = smul.addr %s319, 2
      %s323 = sadd.s32 %s321, %s322
      %s324 = smul.addr %s323, 4
      %s325 = scalar_lea.vmem %s6, %s324
      %s326 = smul.u32 2, %s22
      %v327 = vld [vmem:[%s305] sm:$0xff]
      %v328 = vld [vmem:[%s315] sm:$0xff]
      %v329 = vadd.f32 %v327, %v328
      %v330 = vld [vmem:[%s2] sm:$0xff]
      %v331 = vld [vmem:[%s3] sm:$0xff]
      %333 = vset.pattern.permute.xlu0 0
      %334 = vperm.xlu0 %333, %v331
      %v335 = vpop.permute.xlu0 %334
      %v338 = vcombine.high %v329, %v329
      %vm339 = vcmask 31744
      %v341 = vsel %vm339, %v330, 0
      %vm343 = vcmask 1043456
      %v344 = vsel %vm343, %v329, 0
      %v346 = vsel %vm343, %v338, 0
      %348 = vmatprep.subr.mxu0 0.0
      %349 = vmatpush1.msra.mxu0 0.0
      %350 = vmatprep.subr.mxu0 0.0
      %351 = vmatpush1.msra.mxu0 0.0
      %352 = vmatprep.subr.mxu0 0.0
      %353 = vmatpush1.msra.mxu0 0.0
      %354 = vmatprep.subr.mxu0 0.0
      %355 = vmatpush1.msra.mxu0 0.0
      %356 = vmatprep.subr.mxu0 0.0
      %357 = vmatpush1.msra.mxu0 0.0
      %358 = vmatprep.subr.mxu0 0.0
      %359 = vmatpush1.msra.mxu0 0.0
      %360 = vmatprep.subr.mxu0 0.0
      %361 = vmatpush1.msra.mxu0 0.0
      %362 = vmatprep.subr.mxu0 0.0
      %363 = vmatpush1.msra.mxu0 0.0
      %364 = vmatprep.subr.mxu0 0.0
      %365 = vmatpush1.msra.mxu0 0.0
      %366 = vmatprep.subr.mxu0 0.0
      %367 = vmatpush1.msra.mxu0 0.0
      %368 = vmatprep.subr.mxu0 0.0
      %369 = vmatpush1.msra.mxu0 0.0
      %370 = vmatprep.subr.mxu0 0.0
      %371 = vmatpush1.msra.mxu0 0.0
      %372 = vmatprep.subr.mxu0 0.0
      %373 = vmatpush1.msra.mxu0 0.0
      %374 = vmatprep.subr.mxu0 0.0
      %375 = vmatpush1.msra.mxu0 0.0
      %376 = vmatprep.subr.mxu0 0.0
      %377 = vmatpush1.msra.mxu0 0.0
      %378 = vmatprep.subr.mxu0 %v346
      %379 = vmatpush1.msra.mxu0 %v344
      %380 = vmatprep.subr.mxu0 0.0
      %381 = vmatpush2.msra.mxu0 0.0
      %382 = vmatprep.subr.mxu0 0.0
      %383 = vmatpush2.msra.mxu0 0.0
      %384 = vmatprep.subr.mxu0 0.0
      %385 = vmatpush2.msra.mxu0 0.0
      %386 = vmatprep.subr.mxu0 0.0
      %387 = vmatpush2.msra.mxu0 0.0
      %388 = vmatprep.subr.mxu0 0.0
      %389 = vmatpush2.msra.mxu0 0.0
      %390 = vmatprep.subr.mxu0 0.0
      %391 = vmatpush2.msra.mxu0 0.0
      %392 = vmatprep.subr.mxu0 0.0
      %393 = vmatpush2.msra.mxu0 0.0
      %394 = vmatprep.subr.mxu0 0.0
      %395 = vmatpush2.msra.mxu0 0.0
      %396 = vmatprep.subr.mxu0 0.0
      %397 = vmatpush2.msra.mxu0 0.0
      %398 = vmatprep.subr.mxu0 0.0
      %399 = vmatpush2.msra.mxu0 0.0
      %400 = vmatprep.subr.mxu0 0.0
      %401 = vmatpush2.msra.mxu0 0.0
      %402 = vmatprep.subr.mxu0 0.0
      %403 = vmatpush2.msra.mxu0 0.0
      %404 = vmatprep.subr.mxu0 0.0
      %405 = vmatpush2.msra.mxu0 0.0
      %406 = vmatprep.subr.mxu0 0.0
      %407 = vmatpush2.msra.mxu0 0.0
      %408 = vmatprep.subr.mxu0 0.0
      %409 = vmatpush2.msra.mxu0 0.0
      %410 = vmatprep.subr.mxu0 0.0
      %411 = vmatpush2.msra.mxu0 0.0
      %412 = vmatprep.mubr.f32.mxu0 0.0
      %413 = vmatmul.mubr.f32.gmra.mxu0 %v341
      %v414 = vpop.f32.mrf.mxu0
      %v415 = vadd.f32 %v335, %v414
      %v416 = vpop.f32.mrf.mxu0
      %v417 = vadd.f32 %v335, %v416
      %418 = vdwg.mxu0
      %v419 = vmax.f32 %v415, 0.0
      %v420 = vmax.f32 %v417, 0.0
      %v421 = vld [vmem:[%s4] sm:$0xf]
      %v422 = vld [vmem:[%s5] sm:$0xf]
      %424 = vset.pattern.permute.xlu0 0
      %425 = vperm.xlu0 %424, %v422
      %v426 = vpop.permute.xlu0 %425
      %vm428 = vcmask 64512
      %v430 = vsel %vm428, %v421, 0
      %432 = vmatprep.subr.mxu0 0.0
      %433 = vmatpush1.msra.mxu0 0.0
      %434 = vmatprep.subr.mxu0 0.0
      %435 = vmatpush1.msra.mxu0 0.0
      %436 = vmatprep.subr.mxu0 0.0
      %437 = vmatpush1.msra.mxu0 0.0
      %438 = vmatprep.subr.mxu0 0.0
      %439 = vmatpush1.msra.mxu0 0.0
      %440 = vmatprep.subr.mxu0 0.0
      %441 = vmatpush1.msra.mxu0 0.0
      %442 = vmatprep.subr.mxu0 0.0
      %443 = vmatpush1.msra.mxu0 0.0
      %444 = vmatprep.subr.mxu0 0.0
      %445 = vmatpush1.msra.mxu0 0.0
      %446 = vmatprep.subr.mxu0 0.0
      %447 = vmatpush1.msra.mxu0 0.0
      %448 = vmatprep.subr.mxu0 0.0
      %449 = vmatpush1.msra.mxu0 0.0
      %450 = vmatprep.subr.mxu0 0.0
      %451 = vmatpush1.msra.mxu0 0.0
      %452 = vmatprep.subr.mxu0 0.0
      %453 = vmatpush1.msra.mxu0 0.0
      %454 = vmatprep.subr.mxu0 0.0
      %455 = vmatpush1.msra.mxu0 0.0
      %456 = vmatprep.subr.mxu0 0.0
      %457 = vmatpush1.msra.mxu0 0.0
      %458 = vmatprep.subr.mxu0 0.0
      %459 = vmatpush1.msra.mxu0 0.0
      %460 = vmatprep.subr.mxu0 0.0
      %461 = vmatpush1.msra.mxu0 0.0
      %462 = vmatprep.subr.mxu0 %v420
      %463 = vmatpush1.msra.mxu0 %v419
      %464 = vmatprep.subr.mxu0 0.0
      %465 = vmatpush2.msra.mxu0 0.0
      %466 = vmatprep.subr.mxu0 0.0
      %467 = vmatpush2.msra.mxu0 0.0
      %468 = vmatprep.subr.mxu0 0.0
      %469 = vmatpush2.msra.mxu0 0.0
      %470 = vmatprep.subr.mxu0 0.0
      %471 = vmatpush2.msra.mxu0 0.0
      %472 = vmatprep.subr.mxu0 0.0
      %473 = vmatpush2.msra.mxu0 0.0
      %474 = vmatprep.subr.mxu0 0.0
      %475 = vmatpush2.msra.mxu0 0.0
      %476 = vmatprep.subr.mxu0 0.0
      %477 = vmatpush2.msra.mxu0 0.0
      %478 = vmatprep.subr.mxu0 0.0
      %479 = vmatpush2.msra.mxu0 0.0
      %480 = vmatprep.subr.mxu0 0.0
      %481 = vmatpush2.msra.mxu0 0.0
      %482 = vmatprep.subr.mxu0 0.0
      %483 = vmatpush2.msra.mxu0 0.0
      %484 = vmatprep.subr.mxu0 0.0
      %485 = vmatpush2.msra.mxu0 0.0
      %486 = vmatprep.subr.mxu0 0.0
      %487 = vmatpush2.msra.mxu0 0.0
      %488 = vmatprep.subr.mxu0 0.0
      %489 = vmatpush2.msra.mxu0 0.0
      %490 = vmatprep.subr.mxu0 0.0
      %491 = vmatpush2.msra.mxu0 0.0
      %492 = vmatprep.subr.mxu0 0.0
      %493 = vmatpush2.msra.mxu0 0.0
      %494 = vmatprep.subr.mxu0 0.0
      %495 = vmatpush2.msra.mxu0 0.0
      %496 = vmatprep.mubr.f32.mxu0 0.0
      %497 = vmatmul.mubr.f32.gmra.mxu0 %v430
      %v498 = vpop.f32.mrf.mxu0
      %v499 = vadd.f32 %v426, %v498
      %v500 = vpop.f32.mrf.mxu0
      %v501 = vadd.f32 %v426, %v500
      %502 = vdwg.mxu0
      %v505 = vcombine.low %v499, %v501
      %507 = vst [vmem:[%s325] sm:$0xff] %v505
      %s508 = smul.u32 2, %s22
      %p509 = scmp.lt.s32.totalorder %s21, 1
      %s510 = scalar_select %p509, %s21, 1
      %p511 = scmp.lt.s32.totalorder %s508, 1
      %s512 = scalar_select %p511, %s508, 1
      %s513 = smul.addr %s510, 2
      %s514 = sadd.s32 %s512, %s513
      %s515 = smul.addr %s514, 4
      %s516 = scalar_lea.vmem %s6, %s515
      // Predicated region
      $region45: #{spectral_conv2d.3} parent=43 // pred_check
        %p517 = pneg %p189
      $region46: #{spectral_conv2d.3} parent=43 // pred_check_branch
        %519 = sbr.rel (%p517) target = $region48
      $region47: #{spectral_conv2d.3} parent=43 // pred_region
        %s520 = smul.u32 2, %s22
      $region48: #{spectral_conv2d.3} parent=43 // pred_fallthru
        _
    $region44: #{spectral_conv2d.3} parent=5 // pred_fallthru
      _
    %p521 = scmp.le.s32.totalorder 2, %s12
    // Predicated region
    $region49: #{spectral_conv2d.3} parent=5 // pred_check
      %p522 = pneg %p521
    $region50: #{spectral_conv2d.3} parent=5 // pred_check_branch
      %524 = sbr.rel (%p522) target = $region52
    $region51: #{spectral_conv2d.3} parent=5 // pred_region
      %s525 = ssub.s32 %s12, 2
      // Predicated region
      $region53: #{spectral_conv2d.3} parent=51 // pred_check
        %p526 = pneg %p195
      $region54: #{spectral_conv2d.3} parent=51 // pred_check_branch
        %528 = sbr.rel (%p526) target = $region56
      $region55: #{spectral_conv2d.3} parent=51 // pred_region
        %s529 = smul.u32 2, %s24
        %p530 = scmp.lt.s32.totalorder %s23, 1
        %s531 = scalar_select %p530, %s23, 1
        %p532 = scmp.lt.s32.totalorder %s529, 1
        %s533 = scalar_select %p532, %s529, 1
        %s534 = smul.addr %s531, 2
        %s535 = sadd.s32 %s533, %s534
        %s536 = smul.addr %s535, 4
        %s537 = scalar_lea.vmem %s6, %s536
      $region56: #{spectral_conv2d.3} parent=51 // pred_fallthru
        _
    $region52: #{spectral_conv2d.3} parent=5 // pred_fallthru
      _
  $region6: #{spectral_conv2d.3} parent=0 // loop_footer
    %s16 = sadd.s32 1, %s12
  $region7: #{spectral_conv2d.3} parent=0 // loop_footer_branch
    %11 = sbr.rel target = $region3
  $region8: #{spectral_conv2d.3} parent=0 // loop_exit
    _

</llo_original>
